<compile_context>
chip_gen: v7x
topology: tpu7x:2x2x1
jax: 0.10.0
libtpu: 0.0.40
codegen_flags: <defaults>
</compile_context>

<pallas_src>
import functools

import jax
import jax.numpy as jnp
from jax import lax
from jax.experimental import pallas as pl
from jax.experimental.pallas import tpu as pltpu


def _pick_tile(dim, candidates):
    """Largest candidate that evenly divides `dim`, else the full dim."""
    for c in candidates:
        if dim % c == 0:
            return c
    return dim


# ---------------------------------------------------------------------------
# Linear projection: y = (x @ W.T + b) * out_scale        (PyTorch nn.Linear)
# ---------------------------------------------------------------------------
def _linear_kernel(x_ref, w_ref, b_ref, o_ref, acc_ref, *, out_scale,
                   compute_dtype):
    k = pl.program_id(2)

    @pl.when(k == 0)
    def _():
        acc_ref[...] = jnp.zeros_like(acc_ref)

    x = x_ref[...]                     # (tm, tk)
    w = w_ref[...]                     # (tn, tk)  -- native PyTorch (out, in)
    if compute_dtype is not None:
        # e.g. bf16 on v6e/v7x for peak MXU throughput (f32 accumulation kept).
        x = x.astype(compute_dtype)
        w = w.astype(compute_dtype)

    acc_ref[...] += lax.dot_general(
        x, w,
        dimension_numbers=(((1,), (1,)), ((), ())),    # contract the K dims
        preferred_element_type=jnp.float32)

    @pl.when(k == pl.num_programs(2) - 1)
    def _():
        out = acc_ref[...] + b_ref[...]
        if out_scale != 1.0:
            out = out * out_scale
        o_ref[...] = out.astype(o_ref.dtype)


def linear_forward(x, weight, bias, *, out_scale=1.0, compute_dtype=None):
    """y = (x @ weight.T + bias) * out_scale, weight in PyTorch (N, K) layout."""
    M, K = x.shape
    N, K2 = weight.shape
    assert K == K2, "input_dim mismatch"
    b2d = bias.reshape(1, N)

    tm = _pick_tile(M, (256, 128, 8))
    tn = _pick_tile(N, (256, 128))
    tk = _pick_tile(K, (512, 256, 128))
    grid = (M // tm, N // tn, K // tk)

    itemsize = jnp.dtype(x.dtype).itemsize
    cost = pl.CostEstimate(
        flops=2 * M * N * K,
        transcendentals=0,
        bytes_accessed=(M * K + N * K + N + M * N) * itemsize)

    return pl.pallas_call(
        functools.partial(_linear_kernel, out_scale=out_scale,
                          compute_dtype=compute_dtype),
        out_shape=jax.ShapeDtypeStruct((M, N), x.dtype),
        grid_spec=pltpu.PrefetchScalarGridSpec(
            num_scalar_prefetch=0,
            grid=grid,
            in_specs=[
                pl.BlockSpec((tm, tk), lambda i, j, k: (i, k)),   # x tile
                pl.BlockSpec((tn, tk), lambda i, j, k: (j, k)),   # weight tile
                pl.BlockSpec((1, tn), lambda i, j, k: (0, j)),    # bias tile
            ],
            out_specs=pl.BlockSpec((tm, tn), lambda i, j, k: (i, j)),
            scratch_shapes=[pltpu.VMEM((tm, tn), jnp.float32)],
        ),
        compiler_params=pltpu.CompilerParams(
            dimension_semantics=("parallel", "parallel", "arbitrary")),
        cost_estimate=cost,
    )(x, weight, b2d)


# ---------------------------------------------------------------------------
# Attention: out = softmax(q @ k^T, axis=-1) @ v   (flash-style online softmax)
# ---------------------------------------------------------------------------
def _attention_kernel(q_ref, k_ref, v_ref, o_ref, m_sc, l_sc, acc_sc):
    kv = pl.program_id(2)

    @pl.when(kv == 0)
    def _():
        m_sc[...] = jnp.full_like(m_sc, -jnp.inf)
        l_sc[...] = jnp.zeros_like(l_sc)
        acc_sc[...] = jnp.zeros_like(acc_sc)

    q = q_ref[0, :, :]                 # (tq, D)
    k = k_ref[0, :, :]                 # (tkv, D)
    v = v_ref[0, :, :]                 # (tkv, D)

    s = lax.dot_general(
        q, k,
        dimension_numbers=(((1,), (1,)), ((), ())),     # q @ k^T
        preferred_element_type=jnp.float32)             # (tq, tkv)

    m_prev = m_sc[...]
    m_new = jnp.maximum(m_prev, s.max(axis=-1, keepdims=True))
    alpha = jnp.exp(m_prev - m_new)
    p = jnp.exp(s - m_new)
    l_sc[...] = alpha * l_sc[...] + p.sum(axis=-1, keepdims=True)
    acc_sc[...] = alpha * acc_sc[...] + jnp.dot(
        p.astype(v.dtype), v, preferred_element_type=jnp.float32)
    m_sc[...] = m_new

    @pl.when(kv == pl.num_programs(2) - 1)
    def _():
        o_ref[0, :, :] = (acc_sc[...] / l_sc[...]).astype(o_ref.dtype)


def attention_forward(q, k, v):
    B, Sq, D = q.shape
    _, Skv, _ = k.shape

    tq = _pick_tile(Sq, (256, 128, 8))
    tkv = _pick_tile(Skv, (256, 128))
    grid = (B, Sq // tq, Skv // tkv)

    itemsize = jnp.dtype(q.dtype).itemsize
    cost = pl.CostEstimate(
        flops=4 * B * Sq * Skv * D,
        transcendentals=B * Sq * Skv,
        bytes_accessed=(2 * B * Sq * D + 2 * B * Skv * D) * itemsize)

    return pl.pallas_call(
        _attention_kernel,
        out_shape=jax.ShapeDtypeStruct((B, Sq, D), q.dtype),
        grid_spec=pltpu.PrefetchScalarGridSpec(
            num_scalar_prefetch=0,
            grid=grid,
            in_specs=[
                pl.BlockSpec((1, tq, D), lambda b, qi, ki: (b, qi, 0)),
                pl.BlockSpec((1, tkv, D), lambda b, qi, ki: (b, ki, 0)),
                pl.BlockSpec((1, tkv, D), lambda b, qi, ki: (b, ki, 0)),
            ],
            out_specs=pl.BlockSpec((1, tq, D), lambda b, qi, ki: (b, qi, 0)),
            scratch_shapes=[
                pltpu.VMEM((tq, 1), jnp.float32),    # running max
                pltpu.VMEM((tq, 1), jnp.float32),    # running denominator
                pltpu.VMEM((tq, D), jnp.float32),    # running numerator
            ],
        ),
        compiler_params=pltpu.CompilerParams(
            dimension_semantics=("parallel", "parallel", "arbitrary")),
        cost_estimate=cost,
    )(q, k, v)


# ---------------------------------------------------------------------------
# CrossAttention forward (module semantics)
# ---------------------------------------------------------------------------
def cross_attention_forward(queries, keys, values, params, *,
                            compute_dtype=None):
    # Match PyTorch: 2-D inputs become a batch of 1.
    if queries.ndim == 2:
        queries = queries[None]
    if keys.ndim == 2:
        keys = keys[None]
    if values.ndim == 2:
        values = values[None]

    B, Sq, D = queries.shape
    Bk, Skv, Dk = keys.shape
    assert (B, D) == (Bk, Dk) and values.shape == keys.shape

    scale = float(D) ** 0.5             # module: self.scale = dim ** 0.5

    q = linear_forward(queries.reshape(B * Sq, D), params["wq"], params["bq"],
                       out_scale=1.0 / scale,
                       compute_dtype=compute_dtype).reshape(B, Sq, D)
    k = linear_forward(keys.reshape(B * Skv, D), params["wk"], params["bk"],
                       compute_dtype=compute_dtype).reshape(B, Skv, D)
    v = linear_forward(values.reshape(B * Skv, D), params["wv"], params["bv"],
                       compute_dtype=compute_dtype).reshape(B, Skv, D)

    return attention_forward(q, k, v)


def _reference(queries, keys, values, params, scale):
    q = (queries @ params["wq"].T + params["bq"]) / scale
    k = keys @ params["wk"].T + params["bk"]
    v = values @ params["wv"].T + params["bv"]
    s = jnp.einsum("bqd,bkd->bqk", q, k)
    p = jax.nn.softmax(s, axis=-1)
    return jnp.einsum("bqk,bkd->bqd", p, v)


if __name__ == "__main__":
    DIM = 512                  # hardcoded inside the PyTorch module's __init__
    B, SQ, SKV = 2, 128, 128   # small, but lane/tile aligned

    key = jax.random.PRNGKey(0)
    kq, kk, kv, *wkeys = jax.random.split(key, 9)

    queries = jax.random.normal(kq, (B, SQ, DIM), dtype=jnp.float32)
    keys = jax.random.normal(kk, (B, SKV, DIM), dtype=jnp.float32)
    values = jax.random.normal(kv, (B, SKV, DIM), dtype=jnp.float32)

    # PyTorch default nn.Linear init: U(-1/sqrt(fan_in), 1/sqrt(fan_in)).
    bound = 1.0 / float(DIM) ** 0.5

    def _init_w(k_):
        return jax.random.uniform(k_, (DIM, DIM), minval=-bound, maxval=bound,
                                  dtype=jnp.float32)

    def _init_b(k_):
        return jax.random.uniform(k_, (DIM,), minval=-bound, maxval=bound,
                                  dtype=jnp.float32)

    params = {
        "wq": _init_w(wkeys[0]), "bq": _init_b(wkeys[1]),
        "wk": _init_w(wkeys[2]), "bk": _init_b(wkeys[3]),
        "wv": _init_w(wkeys[4]), "bv": _init_b(wkeys[5]),
    }

    # For peak MXU throughput on v6e/v7x pass compute_dtype=jnp.bfloat16
    # (f32 accumulation is preserved); kept f32 here for a tight check.
    out = cross_attention_forward(queries, keys, values, params)
    out = jax.block_until_ready(out)

    ref = _reference(queries, keys, values, params, float(DIM) ** 0.5)
    assert out.shape == (B, SQ, DIM)
    max_err = float(jnp.max(jnp.abs(out - ref)))
    assert jnp.allclose(out, ref, atol=2e-3, rtol=2e-3), (
        f"mismatch vs reference: max abs err = {max_err}")

    print("KERNEL_OK")
</pallas_src>

<mosaic_0001>
module attributes {stable_mosaic.version = 11 : i64} {
  func.func @_linear_kernel(%arg0: i32, %arg1: i32, %arg2: i32, %arg3: memref<256x512xf32, #tpu.memory_space<vmem>>, %arg4: memref<256x512xf32, #tpu.memory_space<vmem>>, %arg5: memref<1x256xf32, #tpu.memory_space<vmem>>, %arg6: memref<256x256xf32, #tpu.memory_space<vmem>>, %arg7: memref<256x256xf32, #tpu.memory_space<vmem>>) attributes {dimension_semantics = [#tpu.dimension_semantics<parallel>, #tpu.dimension_semantics<parallel>, #tpu.dimension_semantics<arbitrary>], iteration_bounds = array<i64: 1, 2, 1>, scalar_prefetch = 0 : i64, scratch_operands = 1 : i64, tpu.core_type = #tpu.core_type<tc>, window_params = [{transform_indices = @transform_0, window_bounds = array<i64: 256, 512>}, {transform_indices = @transform_1, window_bounds = array<i64: 256, 512>}, {transform_indices = @transform_2, window_bounds = array<i64: 1, 256>}, {transform_indices = @transform_3, window_bounds = array<i64: 256, 256>}]} {
    %c0_i32 = arith.constant 0 : i32
    %0 = arith.cmpi eq, %arg2, %c0_i32 : i32
    %1 = arith.extui %0 : i1 to i32
    %c0_i32_0 = arith.constant 0 : i32
    %2 = arith.cmpi ne, %1, %c0_i32_0 : i32
    scf.if %2 {
      %cst_10 = arith.constant 0.000000e+00 : f32
      %12 = vector.broadcast %cst_10 : f32 to vector<256x256xf32>
      %c0_11 = arith.constant 0 : index
      %c0_12 = arith.constant 0 : index
      %13 = vector.load %arg7[%c0_11, %c0_12] : memref<256x256xf32, #tpu.memory_space<vmem>>, vector<256x256xf32>
      tpu.vector_store %arg7[%c0_11, %c0_12], %12 {strides = array<i32>} : memref<256x256xf32, #tpu.memory_space<vmem>>, vector<256x256xf32>,
    } else {
    }
    %c0 = arith.constant 0 : index
    %c0_1 = arith.constant 0 : index
    %3 = vector.load %arg3[%c0, %c0_1] : memref<256x512xf32, #tpu.memory_space<vmem>>, vector<256x512xf32>
    %c0_2 = arith.constant 0 : index
    %c0_3 = arith.constant 0 : index
    %4 = vector.load %arg4[%c0_2, %c0_3] : memref<256x512xf32, #tpu.memory_space<vmem>>, vector<256x512xf32>
    %c0_4 = arith.constant 0 : index
    %c0_5 = arith.constant 0 : index
    %5 = vector.load %arg7[%c0_4, %c0_5] : memref<256x256xf32, #tpu.memory_space<vmem>>, vector<256x256xf32>
    %cst = arith.constant dense<0.000000e+00> : vector<256x256xf32>
    %6 = tpu.matmul %3, %4, %cst {dimension_numbers = #tpu.dot_dimension_numbers<[1], [1], [0], [0], [0, 0, 1, 0], [], []>} : vector<256x512xf32>, vector<256x512xf32>, vector<256x256xf32> -> vector<256x256xf32>
    %7 = arith.addf %5, %6 : vector<256x256xf32>
    %c0_6 = arith.constant 0 : index
    %c0_7 = arith.constant 0 : index
    %8 = vector.load %arg7[%c0_6, %c0_7] : memref<256x256xf32, #tpu.memory_space<vmem>>, vector<256x256xf32>
    tpu.vector_store %arg7[%c0_6, %c0_7], %7 {strides = array<i32>} : memref<256x256xf32, #tpu.memory_space<vmem>>, vector<256x256xf32>,
    %c0_i32_8 = arith.constant 0 : i32
    %9 = arith.cmpi eq, %arg2, %c0_i32_8 : i32
    %10 = arith.extui %9 : i1 to i32
    %c0_i32_9 = arith.constant 0 : i32
    %11 = arith.cmpi ne, %10, %c0_i32_9 : i32
    scf.if %11 {
      %c0_10 = arith.constant 0 : index
      %c0_11 = arith.constant 0 : index
      %12 = vector.load %arg7[%c0_10, %c0_11] : memref<256x256xf32, #tpu.memory_space<vmem>>, vector<256x256xf32>
      %c0_12 = arith.constant 0 : index
      %c0_13 = arith.constant 0 : index
      %13 = vector.load %arg5[%c0_12, %c0_13] : memref<1x256xf32, #tpu.memory_space<vmem>>, vector<1x256xf32>
      %14 = vector.broadcast %13 : vector<1x256xf32> to vector<256x256xf32>
      %15 = arith.addf %12, %14 : vector<256x256xf32>
      %cst_14 = arith.constant 0.0441941731 : f32
      %16 = vector.broadcast %cst_14 : f32 to vector<256x256xf32>
      %17 = arith.mulf %15, %16 : vector<256x256xf32>
      %c0_15 = arith.constant 0 : index
      %c0_16 = arith.constant 0 : index
      %18 = vector.load %arg6[%c0_15, %c0_16] : memref<256x256xf32, #tpu.memory_space<vmem>>, vector<256x256xf32>
      tpu.vector_store %arg6[%c0_15, %c0_16], %17 {strides = array<i32>} : memref<256x256xf32, #tpu.memory_space<vmem>>, vector<256x256xf32>,
    } else {
    }
    return
  }
  func.func @transform_0(%arg0: i32, %arg1: i32, %arg2: i32) -> (i32, i32) {
    %c0_i32 = arith.constant 0 : i32
    return %arg0, %arg2 : i32, i32
  }
  func.func @transform_1(%arg0: i32, %arg1: i32, %arg2: i32) -> (i32, i32) {
    %c0_i32 = arith.constant 0 : i32
    return %arg1, %arg2 : i32, i32
  }
  func.func @transform_2(%arg0: i32, %arg1: i32, %arg2: i32) -> (i32, i32) {
    %c0_i32 = arith.constant 0 : i32
    %c0_i32_0 = arith.constant 0 : i32
    return %c0_i32, %arg1 : i32, i32
  }
  func.func @transform_3(%arg0: i32, %arg1: i32, %arg2: i32) -> (i32, i32) {
    %c0_i32 = arith.constant 0 : i32
    return %arg0, %arg1 : i32, i32
  }
}

</mosaic_0001>

<llo_original>
// kernel: tpu_custom_call.1
$region0: #{tpu_custom_call.1}
  #allocation0 [shape = 'u32[]', space=smem, size = 0x4, offset = 0x4, fixed_abs, tag = 'smem constant byte address 0x4 - core index']
  #allocation1 [shape = 'u32[144,128]{1,0:T(1,128)}', space=vmem, size = 0x12000, scoped, tag = 'internal scratch']
  #allocation2 [shape = 'f32[256,256]{1,0:T(8,128)}', space=vmem, size = 0x40000, scoped, tag = 'scratch operand']
  %s0 = inlined_call_operand.hbm [shape: f32[256,512], index: 0, kind: input, shape index: {}]
  %s1 = inlined_call_operand.hbm [shape: f32[512,512], index: 1, kind: input, shape index: {}]
  %s2 = inlined_call_operand.vmem [shape: f32[1,512], index: 2, kind: input, shape index: {}]
  %s3 = inlined_call_operand.hbm [shape: f32[256,512], index: 3, kind: output, shape index: {}]
  %s4 = sld [smem:[#allocation0]]
  $region61: #{tpu_custom_call.1} parent=0
    _
  %s6 = ssub.s32 1, %s4
  %s7 = scalar_select 0, %s6, %s4
  $region1: #{tpu_custom_call.1} parent=0
    #allocation3 [shape = 'u8[524288]{0}', space=vmem, size = 0x80000, scoped, tag = 'input window, operand 0, single buffered']
    #allocation4 [shape = 's32[2]{0}', space=sflag, size = 0x8, scoped, tag = 'scoped memory for tpu_custom_call.1']
    #allocation5 [shape = 's32[2]{0}', space=sflag, size = 0x8, scoped, tag = 'scoped memory for tpu_custom_call.1']
    #allocation6 [shape = 'u8[1048576]{0}', space=vmem, size = 0x100000, scoped, tag = 'input window, operand 1']
    #allocation7 [shape = 's32[2]{0}', space=sflag, size = 0x8, scoped, tag = 'scoped memory for tpu_custom_call.1']
    #allocation8 [shape = 'u8[524288]{0}', space=vmem, size = 0x80000, scoped, tag = 'output window, operand 0']
    %8 = vsyncpa [#allocation4], 0
    %9 = vsyncpa [#allocation7], 0
    %s10 = scalar_lea.sflag [#allocation7], 1
    %11 = vsyncpa %s10, 0
    %12 = vsyncpa [#allocation5], 0
    %s13 = scalar_lea.sflag [#allocation5], 1
    %14 = vsyncpa %s13, 0
    loop: start=0, step=1, limit=4
    $region2: #{tpu_custom_call.1} parent=1 // loop_pre_header
      _
    $region3: #{tpu_custom_call.1} parent=1 // loop_header
      %s16 = sphi 0, %s20
      %p17 = scmp.ge.s32.totalorder %s16, 4
      %s23 = sphi 0, %s42
      %s24 = sphi 0, %s38
      %s25 = sphi 0, %s34
      %s26 = sphi 0, %s23
      %s27 = sphi 0, %s24
      %s28 = sphi 0, %s25
      %s29 = sphi 0, %s26
      %s30 = sphi 0, %s27
      %s31 = sphi 0, %s28
      %s47 = sphi 0, %s49
      %s50 = sphi 0, %s47
      %s51 = sphi 0, %s50
      %s67 = sphi 0, %s51
      %s75 = sphi 0, %s77
      %s78 = sphi 0, %s75
      %s79 = sphi 0, %s78
      %s95 = sphi 0, %s79
      %s101 = sphi 0, %s103
      %s104 = sphi 0, %s101
      %s105 = sphi 0, %s104
      %s121 = sphi 0, %s105
      %s129 = sphi 0, %s131
      %s132 = sphi 0, %s129
      %s133 = sphi 0, %s132
      %s149 = sphi 0, %s133
    $region4: #{tpu_custom_call.1} parent=1 // loop_header_branch
      %19 = sbr.rel (%p17) target = $region8
    $region5: #{tpu_custom_call.1} parent=1 // loop_body
      %s21 = ssub.s32 %s16, 1
      %s22 = ssub.s32 %s16, 2
      %s32 = sadd.s32 1, %s25
      %p33 = scmp.ge.s32.totalorder %s32, 1
      %s34 = scalar_select %p33, 0, %s32
      %s35 = sadd.s32 1, %s24
      %s36 = scalar_select %p33, %s35, %s24
      %p37 = scmp.ge.s32.totalorder %s36, 2
      %s38 = scalar_select %p37, 0, %s36
      %s39 = sadd.s32 1, %s23
      %s40 = scalar_select %p37, %s39, %s23
      %p41 = scmp.ge.s32.totalorder %s40, 1
      %s42 = scalar_select %p41, 0, %s40
      %s43 = ssub.s32 %s23, %s42
      %s44 = ssub.s32 %s25, %s34
      %s45 = sor.u32 %s43, %s44
      %p46 = scmp.eq.s32.totalorder %s45, 0
      %s48 = sadd.s32 %s47, 1
      %s49 = scalar_select %p46, %s47, %s48
      %p52 = pneg %p46
      %p53 = scmp.eq.s32.totalorder %s16, 1
      %p54 = por %p52, %p53
      %p55 = scmp.ne.s32.totalorder %s47, %s50
      %p56 = scmp.eq.s32.totalorder %s16, 0
      %p57 = por %p55, %p56
      %p58 = scmp.ne.s32.totalorder %s47, %s50
      %p59 = scmp.eq.s32.totalorder %s21, 1
      %p60 = por %p58, %p59
      %p61 = scmp.ne.s32.totalorder %s50, %s51
      %p62 = scmp.eq.s32.totalorder %s21, 0
      %p63 = por %p61, %p62
      %p64 = scmp.ne.s32.totalorder %s50, %s51
      %p65 = scmp.eq.s32.totalorder %s22, 1
      %p66 = por %p64, %p65
      %p68 = scmp.ne.s32.totalorder %s51, %s67
      %p69 = scmp.eq.s32.totalorder %s22, 0
      %p70 = por %p68, %p69
      %s71 = ssub.s32 %s24, %s38
      %s72 = ssub.s32 %s25, %s34
      %s73 = sor.u32 %s71, %s72
      %p74 = scmp.eq.s32.totalorder %s73, 0
      %s76 = sadd.s32 %s75, 1
      %s77 = scalar_select %p74, %s75, %s76
      %p80 = pneg %p74
      %p81 = scmp.eq.s32.totalorder %s16, 1
      %p82 = por %p80, %p81
      %p83 = scmp.ne.s32.totalorder %s75, %s78
      %p84 = scmp.eq.s32.totalorder %s16, 0
      %p85 = por %p83, %p84
      %p86 = scmp.ne.s32.totalorder %s75, %s78
      %p87 = scmp.eq.s32.totalorder %s21, 1
      %p88 = por %p86, %p87
      %p89 = scmp.ne.s32.totalorder %s78, %s79
      %p90 = scmp.eq.s32.totalorder %s21, 0
      %p91 = por %p89, %p90
      %p92 = scmp.ne.s32.totalorder %s78, %s79
      %p93 = scmp.eq.s32.totalorder %s22, 1
      %p94 = por %p92, %p93
      %p96 = scmp.ne.s32.totalorder %s79, %s95
      %p97 = scmp.eq.s32.totalorder %s22, 0
      %p98 = por %p96, %p97
      %s99 = ssub.s32 %s24, %s38
      %p100 = scmp.eq.s32.totalorder %s99, 0
      %s102 = sadd.s32 %s101, 1
      %s103 = scalar_select %p100, %s101, %s102
      %p106 = pneg %p100
      %p107 = scmp.eq.s32.totalorder %s16, 1
      %p108 = por %p106, %p107
      %p109 = scmp.ne.s32.totalorder %s101, %s104
      %p110 = scmp.eq.s32.totalorder %s16, 0
      %p111 = por %p109, %p110
      %p112 = scmp.ne.s32.totalorder %s101, %s104
      %p113 = scmp.eq.s32.totalorder %s21, 1
      %p114 = por %p112, %p113
      %p115 = scmp.ne.s32.totalorder %s104, %s105
      %p116 = scmp.eq.s32.totalorder %s21, 0
      %p117 = por %p115, %p116
      %p118 = scmp.ne.s32.totalorder %s104, %s105
      %p119 = scmp.eq.s32.totalorder %s22, 1
      %p120 = por %p118, %p119
      %p122 = scmp.ne.s32.totalorder %s105, %s121
      %p123 = scmp.eq.s32.totalorder %s22, 0
      %p124 = por %p122, %p123
      %s125 = ssub.s32 %s23, %s42
      %s126 = ssub.s32 %s24, %s38
      %s127 = sor.u32 %s125, %s126
      %p128 = scmp.eq.s32.totalorder %s127, 0
      %s130 = sadd.s32 %s129, 1
      %s131 = scalar_select %p128, %s129, %s130
      %p134 = pneg %p128
      %p135 = scmp.eq.s32.totalorder %s16, 1
      %p136 = por %p134, %p135
      %p137 = scmp.ne.s32.totalorder %s129, %s132
      %p138 = scmp.eq.s32.totalorder %s16, 0
      %p139 = por %p137, %p138
      %p140 = scmp.ne.s32.totalorder %s129, %s132
      %p141 = scmp.eq.s32.totalorder %s21, 1
      %p142 = por %p140, %p141
      %p143 = scmp.ne.s32.totalorder %s132, %s133
      %p144 = scmp.eq.s32.totalorder %s21, 0
      %p145 = por %p143, %p144
      %p146 = scmp.ne.s32.totalorder %s132, %s133
      %p147 = scmp.eq.s32.totalorder %s22, 1
      %p148 = por %p146, %p147
      %p150 = scmp.ne.s32.totalorder %s133, %s149
      %p151 = scmp.eq.s32.totalorder %s22, 0
      %p152 = por %p150, %p151
      %p153 = scmp.le.s32.totalorder 1, %s16
      %p154 = scmp.lt.s32.totalorder %s16, 3
      %p155 = pnand %p153, %p154
      %p156 = pneg %p155
      // Predicated region
      $region9: #{tpu_custom_call.1} parent=5 // pred_check
        _
      $region10: #{tpu_custom_call.1} parent=5 // pred_check_branch
        %158 = sbr.rel (%p155) target = $region12
      $region11: #{tpu_custom_call.1} parent=5 // pred_region
        %s159 = ssub.s32 %s16, 1
        // Predicated region
        $region13: #{tpu_custom_call.1} parent=11 // pred_check
          %p160 = pneg %p63
        $region14: #{tpu_custom_call.1} parent=11 // pred_check_branch
          %162 = sbr.rel (%p160) target = $region16
        $region15: #{tpu_custom_call.1} parent=11 // pred_region
          %s163 = smul.u32 32, %s26
          %s164 = smul.u32 4, %s28
          %s166 = ssub.s32 16384, 16384
          %167 = vsyncadd [#allocation4], %s166
          %s168 = smul.addr %s163, 4
          %s169 = sadd.s32 %s164, %s168
          %s170 = smul.addr %s169, 128
          %s171 = scalar_lea.hbm %s0, %s170
          %s172 = sshll.u32 [#allocation3], 4
          %s173 = int_to_ptr.vmem [resolvable:$true] %s172
          %178 = dma.hbm_to_vmem [thread:$0]  %s171, 16384, %s173, [#allocation4], 512, 512, 32
        $region16: #{tpu_custom_call.1} parent=11 // pred_fallthru
          _
      $region12: #{tpu_custom_call.1} parent=5 // pred_fallthru
        _
      %p179 = scmp.lt.s32.totalorder %s16, 2
      // Predicated region
      $region17: #{tpu_custom_call.1} parent=5 // pred_check
        %p180 = pneg %p179
      $region18: #{tpu_custom_call.1} parent=5 // pred_check_branch
        %182 = sbr.rel (%p180) target = $region20
      $region19: #{tpu_custom_call.1} parent=5 // pred_region
        // Predicated region
        $region21: #{tpu_custom_call.1} parent=19 // pred_check
          %p183 = pneg %p85
        $region22: #{tpu_custom_call.1} parent=19 // pred_check_branch
          %185 = sbr.rel (%p183) target = $region24
        $region23: #{tpu_custom_call.1} parent=19 // pred_region
          %s186 = sand.u32 %s75, 1
          %s187 = scalar_lea.sflag [#allocation7], %s186
          %s188 = sand.u32 %s75, 1
          %s189 = smul.addr %s188, 1024
          %s190 = scalar_lea.vmem [#allocation6], %s189
          %s191 = smul.u32 32, %s24
          %s192 = smul.u32 4, %s25
          %s194 = ssub.s32 16384, 16384
          %195 = vsyncadd %s187, %s194
          %s196 = smul.addr %s191, 4
          %s197 = sadd.s32 %s192, %s196
          %s198 = smul.addr %s197, 128
          %s199 = scalar_lea.hbm %s1, %s198
          %s200 = sshll.u32 %s190, 4
          %s201 = int_to_ptr.vmem [resolvable:$true] %s200
          %206 = dma.hbm_to_vmem [thread:$0]  %s199, 16384, %s201, %s187, 512, 512, 32
        $region24: #{tpu_custom_call.1} parent=19 // pred_fallthru
          _
        // Predicated region
        $region25: #{tpu_custom_call.1} parent=19 // pred_check
          %p207 = pneg %p111
        $region26: #{tpu_custom_call.1} parent=19 // pred_check_branch
          %209 = sbr.rel (%p207) target = $region28
        $region27: #{tpu_custom_call.1} parent=19 // pred_region
          %s210 = smul.u32 2, %s24
          %p211 = scmp.lt.s32.totalorder %s210, 3
          %s212 = scalar_select %p211, %s210, 3
          %s213 = scalar_lea.vmem %s2, %s212
          %s214 = smul.u32 2, %s24
        $region28: #{tpu_custom_call.1} parent=19 // pred_fallthru
          _
      $region20: #{tpu_custom_call.1} parent=5 // pred_fallthru
        _
      %p215 = scmp.le.s32.totalorder 1, %s16
      %p216 = scmp.lt.s32.totalorder %s16, 3
      %p217 = pnand %p215, %p216
      %p218 = pneg %p217
      // Predicated region
      $region29: #{tpu_custom_call.1} parent=5 // pred_check
        _
      $region30: #{tpu_custom_call.1} parent=5 // pred_check_branch
        %220 = sbr.rel (%p217) target = $region32
      $region31: #{tpu_custom_call.1} parent=5 // pred_region
        %s221 = ssub.s32 %s16, 1
        // Predicated region
        $region33: #{tpu_custom_call.1} parent=31 // pred_check
          %p222 = pneg %p63
        $region34: #{tpu_custom_call.1} parent=31 // pred_check_branch
          %224 = sbr.rel (%p222) target = $region36
        $region35: #{tpu_custom_call.1} parent=31 // pred_region
          %225 = dma.done [#allocation4], 16384
        $region36: #{tpu_custom_call.1} parent=31 // pred_fallthru
          _
        %s226 = sand.u32 %s78, 1
        %s227 = scalar_lea.sflag [#allocation7], %s226
        %s228 = sand.u32 %s78, 1
        %s229 = smul.addr %s228, 1024
        %s230 = scalar_lea.vmem [#allocation6], %s229
        // Predicated region
        $region37: #{tpu_custom_call.1} parent=31 // pred_check
          %p231 = pneg %p91
        $region38: #{tpu_custom_call.1} parent=31 // pred_check_branch
          %233 = sbr.rel (%p231) target = $region40
        $region39: #{tpu_custom_call.1} parent=31 // pred_region
          %234 = dma.done %s227, 16384
        $region40: #{tpu_custom_call.1} parent=31 // pred_fallthru
          _
        %p235 = pneg %p63
        %p236 = pneg %p60
        %s237 = sand.u32 %s78, 1
        %s238 = scalar_lea.sflag [#allocation7], %s237
        %s239 = sand.u32 %s78, 1
        %s240 = smul.addr %s239, 1024
        %s241 = scalar_lea.vmem [#allocation6], %s240
        %p242 = pneg %p91
        %p243 = pneg %p88
        %s244 = smul.u32 2, %s27
        %p245 = scmp.lt.s32.totalorder %s244, 3
        %s246 = scalar_select %p245, %s244, 3
        %s247 = scalar_lea.vmem %s2, %s246
        %p248 = pneg %p117
        %p249 = pneg %p114
        %p250 = pneg %p145
        %p251 = pneg %p142
        %s252 = sand.u32 %s132, 1
        %s253 = scalar_lea.sflag [#allocation5], %s252
        %s254 = sand.u32 %s132, 1
        %s255 = smul.addr %s254, 512
        %s256 = scalar_lea.vmem [#allocation8], %s255
        %s257 = smul.u32 32, %s26
        %s258 = smul.u32 4, %s28
        %s259 = smul.u32 32, %s27
        %s260 = smul.u32 4, %s28
        %s261 = smul.u32 2, %s27
        %p262 = scmp.lt.s32.totalorder %s261, 3
        %s263 = scalar_select %p262, %s261, 3
        %s264 = scalar_lea.vmem %s2, %s263
        %s265 = smul.u32 2, %s27
        %s266 = smul.u32 32, %s26
        %s267 = smul.u32 2, %s27
        %p268 = scmp.eq.s32.totalorder %s28, 0
        // Predicated region
        $region41: #{tpu_custom_call.1} parent=31 // pred_check
          %p269 = pneg %p268
        $region42: #{tpu_custom_call.1} parent=31 // pred_check_branch
          %271 = sbr.rel (%p269) target = $region44
        $region43: #{tpu_custom_call.1} parent=31 // pred_region
          %272 = vst [vmem:[#allocation2] sm:$0xff] 0.0
          %273 = vst [vmem:[#allocation2 + $0x8] sm:$0xff] 0.0
          %274 = vst [vmem:[#allocation2 + $0x10] sm:$0xff] 0.0
          %275 = vst [vmem:[#allocation2 + $0x18] sm:$0xff] 0.0
          %276 = vst [vmem:[#allocation2 + $0x20] sm:$0xff] 0.0
          %277 = vst [vmem:[#allocation2 + $0x28] sm:$0xff] 0.0
          %278 = vst [vmem:[#allocation2 + $0x30] sm:$0xff] 0.0
          %279 = vst [vmem:[#allocation2 + $0x38] sm:$0xff] 0.0
          %280 = vst [vmem:[#allocation2 + $0x40] sm:$0xff] 0.0
          %281 = vst [vmem:[#allocation2 + $0x48] sm:$0xff] 0.0
          %282 = vst [vmem:[#allocation2 + $0x50] sm:$0xff] 0.0
          %283 = vst [vmem:[#allocation2 + $0x58] sm:$0xff] 0.0
          %284 = vst [vmem:[#allocation2 + $0x60] sm:$0xff] 0.0
          %285 = vst [vmem:[#allocation2 + $0x68] sm:$0xff] 0.0
          %286 = vst [vmem:[#allocation2 + $0x70] sm:$0xff] 0.0
          %287 = vst [vmem:[#allocation2 + $0x78] sm:$0xff] 0.0
          %288 = vst [vmem:[#allocation2 + $0x80] sm:$0xff] 0.0
          %289 = vst [vmem:[#allocation2 + $0x88] sm:$0xff] 0.0
          %290 = vst [vmem:[#allocation2 + $0x90] sm:$0xff] 0.0
          %291 = vst [vmem:[#allocation2 + $0x98] sm:$0xff] 0.0
          %292 = vst [vmem:[#allocation2 + $0xa0] sm:$0xff] 0.0
          %293 = vst [vmem:[#allocation2 + $0xa8] sm:$0xff] 0.0
          %294 = vst [vmem:[#allocation2 + $0xb0] sm:$0xff] 0.0
          %295 = vst [vmem:[#allocation2 + $0xb8] sm:$0xff] 0.0
          %296 = vst [vmem:[#allocation2 + $0xc0] sm:$0xff] 0.0
          %297 = vst [vmem:[#allocation2 + $0xc8] sm:$0xff] 0.0
          %298 = vst [vmem:[#allocation2 + $0xd0] sm:$0xff] 0.0
          %299 = vst [vmem:[#allocation2 + $0xd8] sm:$0xff] 0.0
          %300 = vst [vmem:[#allocation2 + $0xe0] sm:$0xff] 0.0
          %301 = vst [vmem:[#allocation2 + $0xe8] sm:$0xff] 0.0
          %302 = vst [vmem:[#allocation2 + $0xf0] sm:$0xff] 0.0
          %303 = vst [vmem:[#allocation2 + $0xf8] sm:$0xff] 0.0
          %304 = vst [vmem:[#allocation2 + $0x100] sm:$0xff] 0.0
          %305 = vst [vmem:[#allocation2 + $0x108] sm:$0xff] 0.0
          %306 = vst [vmem:[#allocation2 + $0x110] sm:$0xff] 0.0
          %307 = vst [vmem:[#allocation2 + $0x118] sm:$0xff] 0.0
          %308 = vst [vmem:[#allocation2 + $0x120] sm:$0xff] 0.0
          %309 = vst [vmem:[#allocation2 + $0x128] sm:$0xff] 0.0
          %310 = vst [vmem:[#allocation2 + $0x130] sm:$0xff] 0.0
          %311 = vst [vmem:[#allocation2 + $0x138] sm:$0xff] 0.0
          %312 = vst [vmem:[#allocation2 + $0x140] sm:$0xff] 0.0
          %313 = vst [vmem:[#allocation2 + $0x148] sm:$0xff] 0.0
          %314 = vst [vmem:[#allocation2 + $0x150] sm:$0xff] 0.0
          %315 = vst [vmem:[#allocation2 + $0x158] sm:$0xff] 0.0
          %316 = vst [vmem:[#allocation2 + $0x160] sm:$0xff] 0.0
          %317 = vst [vmem:[#allocation2 + $0x168] sm:$0xff] 0.0
          %318 = vst [vmem:[#allocation2 + $0x170] sm:$0xff] 0.0
          %319 = vst [vmem:[#allocation2 + $0x178] sm:$0xff] 0.0
          %320 = vst [vmem:[#allocation2 + $0x180] sm:$0xff] 0.0
          %321 = vst [vmem:[#allocation2 + $0x188] sm:$0xff] 0.0
          %322 = vst [vmem:[#allocation2 + $0x190] sm:$0xff] 0.0
          %323 = vst [vmem:[#allocation2 + $0x198] sm:$0xff] 0.0
          %324 = vst [vmem:[#allocation2 + $0x1a0] sm:$0xff] 0.0
          %325 = vst [vmem:[#allocation2 + $0x1a8] sm:$0xff] 0.0
          %326 = vst [vmem:[#allocation2 + $0x1b0] sm:$0xff] 0.0
          %327 = vst [vmem:[#allocation2 + $0x1b8] sm:$0xff] 0.0
          %328 = vst [vmem:[#allocation2 + $0x1c0] sm:$0xff] 0.0
          %329 = vst [vmem:[#allocation2 + $0x1c8] sm:$0xff] 0.0
          %330 = vst [vmem:[#allocation2 + $0x1d0] sm:$0xff] 0.0
          %331 = vst [vmem:[#allocation2 + $0x1d8] sm:$0xff] 0.0
          %332 = vst [vmem:[#allocation2 + $0x1e0] sm:$0xff] 0.0
          %333 = vst [vmem:[#allocation2 + $0x1e8] sm:$0xff] 0.0
          %334 = vst [vmem:[#allocation2 + $0x1f0] sm:$0xff] 0.0
          %335 = vst [vmem:[#allocation2 + $0x1f8] sm:$0xff] 0.0
        $region44: #{tpu_custom_call.1} parent=31 // pred_fallthru
          _
        %v336 = vld [vmem:[#allocation3] sm:$0xff]
        %v337 = vld [vmem:[#allocation3 + $0x8] sm:$0xff]
        %v338 = vld [vmem:[#allocation3 + $0x10] sm:$0xff]
        %v339 = vld [vmem:[#allocation3 + $0x18] sm:$0xff]
        %v340 = vld [vmem:[#allocation3 + $0x20] sm:$0xff]
        %v341 = vld [vmem:[#allocation3 + $0x28] sm:$0xff]
        %v342 = vld [vmem:[#allocation3 + $0x30] sm:$0xff]
        %v343 = vld [vmem:[#allocation3 + $0x38] sm:$0xff]
        %v344 = vld [vmem:[#allocation3 + $0x40] sm:$0xff]
        %v345 = vld [vmem:[#allocation3 + $0x48] sm:$0xff]
        %v346 = vld [vmem:[#allocation3 + $0x50] sm:$0xff]
        %v347 = vld [vmem:[#allocation3 + $0x58] sm:$0xff]
        %v348 = vld [vmem:[#allocation3 + $0x60] sm:$0xff]
        %v349 = vld [vmem:[#allocation3 + $0x68] sm:$0xff]
        %v350 = vld [vmem:[#allocation3 + $0x70] sm:$0xff]
        %v351 = vld [vmem:[#allocation3 + $0x78] sm:$0xff]
        %v352 = vld [vmem:[#allocation3 + $0x80] sm:$0xff]
        %v353 = vld [vmem:[#allocation3 + $0x88] sm:$0xff]
        %v354 = vld [vmem:[#allocation3 + $0x90] sm:$0xff]
        %v355 = vld [vmem:[#allocation3 + $0x98] sm:$0xff]
        %v356 = vld [vmem:[#allocation3 + $0xa0] sm:$0xff]
        %v357 = vld [vmem:[#allocation3 + $0xa8] sm:$0xff]
        %v358 = vld [vmem:[#allocation3 + $0xb0] sm:$0xff]
        %v359 = vld [vmem:[#allocation3 + $0xb8] sm:$0xff]
        %v360 = vld [vmem:[#allocation3 + $0xc0] sm:$0xff]
        %v361 = vld [vmem:[#allocation3 + $0xc8] sm:$0xff]
        %v362 = vld [vmem:[#allocation3 + $0xd0] sm:$0xff]
        %v363 = vld [vmem:[#allocation3 + $0xd8] sm:$0xff]
        %v364 = vld [vmem:[#allocation3 + $0xe0] sm:$0xff]
        %v365 = vld [vmem:[#allocation3 + $0xe8] sm:$0xff]
        %v366 = vld [vmem:[#allocation3 + $0xf0] sm:$0xff]
        %v367 = vld [vmem:[#allocation3 + $0xf8] sm:$0xff]
        %v368 = vld [vmem:[#allocation3 + $0x100] sm:$0xff]
        %v369 = vld [vmem:[#allocation3 + $0x108] sm:$0xff]
        %v370 = vld [vmem:[#allocation3 + $0x110] sm:$0xff]
        %v371 = vld [vmem:[#allocation3 + $0x118] sm:$0xff]
        %v372 = vld [vmem:[#allocation3 + $0x120] sm:$0xff]
        %v373 = vld [vmem:[#allocation3 + $0x128] sm:$0xff]
        %v374 = vld [vmem:[#allocation3 + $0x130] sm:$0xff]
        %v375 = vld [vmem:[#allocation3 + $0x138] sm:$0xff]
        %v376 = vld [vmem:[#allocation3 + $0x140] sm:$0xff]
        %v377 = vld [vmem:[#allocation3 + $0x148] sm:$0xff]
        %v378 = vld [vmem:[#allocation3 + $0x150] sm:$0xff]
        %v379 = vld [vmem:[#allocation3 + $0x158] sm:$0xff]
        %v380 = vld [vmem:[#allocation3 + $0x160] sm:$0xff]
        %v381 = vld [vmem:[#allocation3 + $0x168] sm:$0xff]
        %v382 = vld [vmem:[#allocation3 + $0x170] sm:$0xff]
        %v383 = vld [vmem:[#allocation3 + $0x178] sm:$0xff]
        %v384 = vld [vmem:[#allocation3 + $0x180] sm:$0xff]
        %v385 = vld [vmem:[#allocation3 + $0x188] sm:$0xff]
        %v386 = vld [vmem:[#allocation3 + $0x190] sm:$0xff]
        %v387 = vld [vmem:[#allocation3 + $0x198] sm:$0xff]
        %v388 = vld [vmem:[#allocation3 + $0x1a0] sm:$0xff]
        %v389 = vld [vmem:[#allocation3 + $0x1a8] sm:$0xff]
        %v390 = vld [vmem:[#allocation3 + $0x1b0] sm:$0xff]
        %v391 = vld [vmem:[#allocation3 + $0x1b8] sm:$0xff]
        %v392 = vld [vmem:[#allocation3 + $0x1c0] sm:$0xff]
        %v393 = vld [vmem:[#allocation3 + $0x1c8] sm:$0xff]
        %v394 = vld [vmem:[#allocation3 + $0x1d0] sm:$0xff]
        %v395 = vld [vmem:[#allocation3 + $0x1d8] sm:$0xff]
        %v396 = vld [vmem:[#allocation3 + $0x1e0] sm:$0xff]
        %v397 = vld [vmem:[#allocation3 + $0x1e8] sm:$0xff]
        %v398 = vld [vmem:[#allocation3 + $0x1f0] sm:$0xff]
        %v399 = vld [vmem:[#allocation3 + $0x1f8] sm:$0xff]
        %v400 = vld [vmem:[#allocation3 + $0x200] sm:$0xff]
        %v401 = vld [vmem:[#allocation3 + $0x208] sm:$0xff]
        %v402 = vld [vmem:[#allocation3 + $0x210] sm:$0xff]
        %v403 = vld [vmem:[#allocation3 + $0x218] sm:$0xff]
        %v404 = vld [vmem:[#allocation3 + $0x220] sm:$0xff]
        %v405 = vld [vmem:[#allocation3 + $0x228] sm:$0xff]
        %v406 = vld [vmem:[#allocation3 + $0x230] sm:$0xff]
        %v407 = vld [vmem:[#allocation3 + $0x238] sm:$0xff]
        %v408 = vld [vmem:[#allocation3 + $0x240] sm:$0xff]
        %v409 = vld [vmem:[#allocation3 + $0x248] sm:$0xff]
        %v410 = vld [vmem:[#allocation3 + $0x250] sm:$0xff]
        %v411 = vld [vmem:[#allocation3 + $0x258] sm:$0xff]
        %v412 = vld [vmem:[#allocation3 + $0x260] sm:$0xff]
        %v413 = vld [vmem:[#allocation3 + $0x268] sm:$0xff]
        %v414 = vld [vmem:[#allocation3 + $0x270] sm:$0xff]
        %v415 = vld [vmem:[#allocation3 + $0x278] sm:$0xff]
        %v416 = vld [vmem:[#allocation3 + $0x280] sm:$0xff]
        %v417 = vld [vmem:[#allocation3 + $0x288] sm:$0xff]
        %v418 = vld [vmem:[#allocation3 + $0x290] sm:$0xff]
        %v419 = vld [vmem:[#allocation3 + $0x298] sm:$0xff]
        %v420 = vld [vmem:[#allocation3 + $0x2a0] sm:$0xff]
        %v421 = vld [vmem:[#allocation3 + $0x2a8] sm:$0xff]
        %v422 = vld [vmem:[#allocation3 + $0x2b0] sm:$0xff]
        %v423 = vld [vmem:[#allocation3 + $0x2b8] sm:$0xff]
        %v424 = vld [vmem:[#allocation3 + $0x2c0] sm:$0xff]
        %v425 = vld [vmem:[#allocation3 + $0x2c8] sm:$0xff]
        %v426 = vld [vmem:[#allocation3 + $0x2d0] sm:$0xff]
        %v427 = vld [vmem:[#allocation3 + $0x2d8] sm:$0xff]
        %v428 = vld [vmem:[#allocation3 + $0x2e0] sm:$0xff]
        %v429 = vld [vmem:[#allocation3 + $0x2e8] sm:$0xff]
        %v430 = vld [vmem:[#allocation3 + $0x2f0] sm:$0xff]
        %v431 = vld [vmem:[#allocation3 + $0x2f8] sm:$0xff]
        %v432 = vld [vmem:[#allocation3 + $0x300] sm:$0xff]
        %v433 = vld [vmem:[#allocation3 + $0x308] sm:$0xff]
        %v434 = vld [vmem:[#allocation3 + $0x310] sm:$0xff]
        %v435 = vld [vmem:[#allocation3 + $0x318] sm:$0xff]
        %v436 = vld [vmem:[#allocation3 + $0x320] sm:$0xff]
        %v437 = vld [vmem:[#allocation3 + $0x328] sm:$0xff]
        %v438 = vld [vmem:[#allocation3 + $0x330] sm:$0xff]
        %v439 = vld [vmem:[#allocation3 + $0x338] sm:$0xff]
        %v440 = vld [vmem:[#allocation3 + $0x340] sm:$0xff]
        %v441 = vld [vmem:[#allocation3 + $0x348] sm:$0xff]
        %v442 = vld [vmem:[#allocation3 + $0x350] sm:$0xff]
        %v443 = vld [vmem:[#allocation3 + $0x358] sm:$0xff]
        %v444 = vld [vmem:[#allocation3 + $0x360] sm:$0xff]
        %v445 = vld [vmem:[#allocation3 + $0x368] sm:$0xff]
        %v446 = vld [vmem:[#allocation3 + $0x370] sm:$0xff]
        %v447 = vld [vmem:[#allocation3 + $0x378] sm:$0xff]
        %v448 = vld [vmem:[#allocation3 + $0x380] sm:$0xff]
        %v449 = vld [vmem:[#allocation3 + $0x388] sm:$0xff]
        %v450 = vld [vmem:[#allocation3 + $0x390] sm:$0xff]
        %v451 = vld [vmem:[#allocation3 + $0x398] sm:$0xff]
        %v452 = vld [vmem:[#allocation3 + $0x3a0] sm:$0xff]
        %v453 = vld [vmem:[#allocation3 + $0x3a8] sm:$0xff]
        %v454 = vld [vmem:[#allocation3 + $0x3b0] sm:$0xff]
        %v455 = vld [vmem:[#allocation3 + $0x3b8] sm:$0xff]
        %v456 = vld [vmem:[#allocation3 + $0x3c0] sm:$0xff]
        %v457 = vld [vmem:[#allocation3 + $0x3c8] sm:$0xff]
        %v458 = vld [vmem:[#allocation3 + $0x3d0] sm:$0xff]
        %v459 = vld [vmem:[#allocation3 + $0x3d8] sm:$0xff]
        %v460 = vld [vmem:[#allocation3 + $0x3e0] sm:$0xff]
        %v461 = vld [vmem:[#allocation3 + $0x3e8] sm:$0xff]
        %v462 = vld [vmem:[#allocation3 + $0x3f0] sm:$0xff]
        %v463 = vld [vmem:[#allocation3 + $0x3f8] sm:$0xff]
        %v464 = vld [vmem:[%s230] sm:$0xff]
        %v465 = vld [vmem:[%s230 + $0x8] sm:$0xff]
        %v466 = vld [vmem:[%s230 + $0x10] sm:$0xff]
        %v467 = vld [vmem:[%s230 + $0x18] sm:$0xff]
        %v468 = vld [vmem:[%s230 + $0x20] sm:$0xff]
        %v469 = vld [vmem:[%s230 + $0x28] sm:$0xff]
        %v470 = vld [vmem:[%s230 + $0x30] sm:$0xff]
        %v471 = vld [vmem:[%s230 + $0x38] sm:$0xff]
        %v472 = vld [vmem:[%s230 + $0x40] sm:$0xff]
        %v473 = vld [vmem:[%s230 + $0x48] sm:$0xff]
        %v474 = vld [vmem:[%s230 + $0x50] sm:$0xff]
        %v475 = vld [vmem:[%s230 + $0x58] sm:$0xff]
        %v476 = vld [vmem:[%s230 + $0x60] sm:$0xff]
        %v477 = vld [vmem:[%s230 + $0x68] sm:$0xff]
        %v478 = vld [vmem:[%s230 + $0x70] sm:$0xff]
        %v479 = vld [vmem:[%s230 + $0x78] sm:$0xff]
        %v480 = vld [vmem:[%s230 + $0x80] sm:$0xff]
        %v481 = vld [vmem:[%s230 + $0x88] sm:$0xff]
        %v482 = vld [vmem:[%s230 + $0x90] sm:$0xff]
        %v483 = vld [vmem:[%s230 + $0x98] sm:$0xff]
        %v484 = vld [vmem:[%s230 + $0xa0] sm:$0xff]
        %v485 = vld [vmem:[%s230 + $0xa8] sm:$0xff]
        %v486 = vld [vmem:[%s230 + $0xb0] sm:$0xff]
        %v487 = vld [vmem:[%s230 + $0xb8] sm:$0xff]
        %v488 = vld [vmem:[%s230 + $0xc0] sm:$0xff]
        %v489 = vld [vmem:[%s230 + $0xc8] sm:$0xff]
        %v490 = vld [vmem:[%s230 + $0xd0] sm:$0xff]
        %v491 = vld [vmem:[%s230 + $0xd8] sm:$0xff]
        %v492 = vld [vmem:[%s230 + $0xe0] sm:$0xff]
        %v493 = vld [vmem:[%s230 + $0xe8] sm:$0xff]
        %v494 = vld [vmem:[%s230 + $0xf0] sm:$0xff]
        %v495 = vld [vmem:[%s230 + $0xf8] sm:$0xff]
        %v496 = vld [vmem:[%s230 + $0x100] sm:$0xff]
        %v497 = vld [vmem:[%s230 + $0x108] sm:$0xff]
        %v498 = vld [vmem:[%s230 + $0x110] sm:$0xff]
        %v499 = vld [vmem:[%s230 + $0x118] sm:$0xff]
        %v500 = vld [vmem:[%s230 + $0x120] sm:$0xff]
        %v501 = vld [vmem:[%s230 + $0x128] sm:$0xff]
        %v502 = vld [vmem:[%s230 + $0x130] sm:$0xff]
        %v503 = vld [vmem:[%s230 + $0x138] sm:$0xff]
        %v504 = vld [vmem:[%s230 + $0x140] sm:$0xff]
        %v505 = vld [vmem:[%s230 + $0x148] sm:$0xff]
        %v506 = vld [vmem:[%s230 + $0x150] sm:$0xff]
        %v507 = vld [vmem:[%s230 + $0x158] sm:$0xff]
        %v508 = vld [vmem:[%s230 + $0x160] sm:$0xff]
        %v509 = vld [vmem:[%s230 + $0x168] sm:$0xff]
        %v510 = vld [vmem:[%s230 + $0x170] sm:$0xff]
        %v511 = vld [vmem:[%s230 + $0x178] sm:$0xff]
        %v512 = vld [vmem:[%s230 + $0x180] sm:$0xff]
        %v513 = vld [vmem:[%s230 + $0x188] sm:$0xff]
        %v514 = vld [vmem:[%s230 + $0x190] sm:$0xff]
        %v515 = vld [vmem:[%s230 + $0x198] sm:$0xff]
        %v516 = vld [vmem:[%s230 + $0x1a0] sm:$0xff]
        %v517 = vld [vmem:[%s230 + $0x1a8] sm:$0xff]
        %v518 = vld [vmem:[%s230 + $0x1b0] sm:$0xff]
        %v519 = vld [vmem:[%s230 + $0x1b8] sm:$0xff]
        %v520 = vld [vmem:[%s230 + $0x1c0] sm:$0xff]
        %v521 = vld [vmem:[%s230 + $0x1c8] sm:$0xff]
        %v522 = vld [vmem:[%s230 + $0x1d0] sm:$0xff]
        %v523 = vld [vmem:[%s230 + $0x1d8] sm:$0xff]
        %v524 = vld [vmem:[%s230 + $0x1e0] sm:$0xff]
        %v525 = vld [vmem:[%s230 + $0x1e8] sm:$0xff]
        %v526 = vld [vmem:[%s230 + $0x1f0] sm:$0xff]
        %v527 = vld [vmem:[%s230 + $0x1f8] sm:$0xff]
        %v528 = vld [vmem:[%s230 + $0x200] sm:$0xff]
        %v529 = vld [vmem:[%s230 + $0x208] sm:$0xff]
        %v530 = vld [vmem:[%s230 + $0x210] sm:$0xff]
        %v531 = vld [vmem:[%s230 + $0x218] sm:$0xff]
        %v532 = vld [vmem:[%s230 + $0x220] sm:$0xff]
        %v533 = vld [vmem:[%s230 + $0x228] sm:$0xff]
        %v534 = vld [vmem:[%s230 + $0x230] sm:$0xff]
        %v535 = vld [vmem:[%s230 + $0x238] sm:$0xff]
        %v536 = vld [vmem:[%s230 + $0x240] sm:$0xff]
        %v537 = vld [vmem:[%s230 + $0x248] sm:$0xff]
        %v538 = vld [vmem:[%s230 + $0x250] sm:$0xff]
        %v539 = vld [vmem:[%s230 + $0x258] sm:$0xff]
        %v540 = vld [vmem:[%s230 + $0x260] sm:$0xff]
        %v541 = vld [vmem:[%s230 + $0x268] sm:$0xff]
        %v542 = vld [vmem:[%s230 + $0x270] sm:$0xff]
        %v543 = vld [vmem:[%s230 + $0x278] sm:$0xff]
        %v544 = vld [vmem:[%s230 + $0x280] sm:$0xff]
        %v545 = vld [vmem:[%s230 + $0x288] sm:$0xff]
        %v546 = vld [vmem:[%s230 + $0x290] sm:$0xff]
        %v547 = vld [vmem:[%s230 + $0x298] sm:$0xff]
        %v548 = vld [vmem:[%s230 + $0x2a0] sm:$0xff]
        %v549 = vld [vmem:[%s230 + $0x2a8] sm:$0xff]
        %v550 = vld [vmem:[%s230 + $0x2b0] sm:$0xff]
        %v551 = vld [vmem:[%s230 + $0x2b8] sm:$0xff]
        %v552 = vld [vmem:[%s230 + $0x2c0] sm:$0xff]
        %v553 = vld [vmem:[%s230 + $0x2c8] sm:$0xff]
        %v554 = vld [vmem:[%s230 + $0x2d0] sm:$0xff]
        %v555 = vld [vmem:[%s230 + $0x2d8] sm:$0xff]
        %v556 = vld [vmem:[%s230 + $0x2e0] sm:$0xff]
        %v557 = vld [vmem:[%s230 + $0x2e8] sm:$0xff]
        %v558 = vld [vmem:[%s230 + $0x2f0] sm:$0xff]
        %v559 = vld [vmem:[%s230 + $0x2f8] sm:$0xff]
        %v560 = vld [vmem:[%s230 + $0x300] sm:$0xff]
        %v561 = vld [vmem:[%s230 + $0x308] sm:$0xff]
        %v562 = vld [vmem:[%s230 + $0x310] sm:$0xff]
        %v563 = vld [vmem:[%s230 + $0x318] sm:$0xff]
        %v564 = vld [vmem:[%s230 + $0x320] sm:$0xff]
        %v565 = vld [vmem:[%s230 + $0x328] sm:$0xff]
        %v566 = vld [vmem:[%s230 + $0x330] sm:$0xff]
        %v567 = vld [vmem:[%s230 + $0x338] sm:$0xff]
        %v568 = vld [vmem:[%s230 + $0x340] sm:$0xff]
        %v569 = vld [vmem:[%s230 + $0x348] sm:$0xff]
        %v570 = vld [vmem:[%s230 + $0x350] sm:$0xff]
        %v571 = vld [vmem:[%s230 + $0x358] sm:$0xff]
        %v572 = vld [vmem:[%s230 + $0x360] sm:$0xff]
        %v573 = vld [vmem:[%s230 + $0x368] sm:$0xff]
        %v574 = vld [vmem:[%s230 + $0x370] sm:$0xff]
        %v575 = vld [vmem:[%s230 + $0x378] sm:$0xff]
        %v576 = vld [vmem:[%s230 + $0x380] sm:$0xff]
        %v577 = vld [vmem:[%s230 + $0x388] sm:$0xff]
        %v578 = vld [vmem:[%s230 + $0x390] sm:$0xff]
        %v579 = vld [vmem:[%s230 + $0x398] sm:$0xff]
        %v580 = vld [vmem:[%s230 + $0x3a0] sm:$0xff]
        %v581 = vld [vmem:[%s230 + $0x3a8] sm:$0xff]
        %v582 = vld [vmem:[%s230 + $0x3b0] sm:$0xff]
        %v583 = vld [vmem:[%s230 + $0x3b8] sm:$0xff]
        %v584 = vld [vmem:[%s230 + $0x3c0] sm:$0xff]
        %v585 = vld [vmem:[%s230 + $0x3c8] sm:$0xff]
        %v586 = vld [vmem:[%s230 + $0x3d0] sm:$0xff]
        %v587 = vld [vmem:[%s230 + $0x3d8] sm:$0xff]
        %v588 = vld [vmem:[%s230 + $0x3e0] sm:$0xff]
        %v589 = vld [vmem:[%s230 + $0x3e8] sm:$0xff]
        %v590 = vld [vmem:[%s230 + $0x3f0] sm:$0xff]
        %v591 = vld [vmem:[%s230 + $0x3f8] sm:$0xff]
        %v592 = vld [vmem:[#allocation2] sm:$0xff]
        %v593 = vld [vmem:[#allocation2 + $0x8] sm:$0xff]
        %v594 = vld [vmem:[#allocation2 + $0x10] sm:$0xff]
        %v595 = vld [vmem:[#allocation2 + $0x18] sm:$0xff]
        %v596 = vld [vmem:[#allocation2 + $0x20] sm:$0xff]
        %v597 = vld [vmem:[#allocation2 + $0x28] sm:$0xff]
        %v598 = vld [vmem:[#allocation2 + $0x30] sm:$0xff]
        %v599 = vld [vmem:[#allocation2 + $0x38] sm:$0xff]
        %v600 = vld [vmem:[#allocation2 + $0x40] sm:$0xff]
        %v601 = vld [vmem:[#allocation2 + $0x48] sm:$0xff]
        %v602 = vld [vmem:[#allocation2 + $0x50] sm:$0xff]
        %v603 = vld [vmem:[#allocation2 + $0x58] sm:$0xff]
        %v604 = vld [vmem:[#allocation2 + $0x60] sm:$0xff]
        %v605 = vld [vmem:[#allocation2 + $0x68] sm:$0xff]
        %v606 = vld [vmem:[#allocation2 + $0x70] sm:$0xff]
        %v607 = vld [vmem:[#allocation2 + $0x78] sm:$0xff]
        %v608 = vld [vmem:[#allocation2 + $0x80] sm:$0xff]
        %v609 = vld [vmem:[#allocation2 + $0x88] sm:$0xff]
        %v610 = vld [vmem:[#allocation2 + $0x90] sm:$0xff]
        %v611 = vld [vmem:[#allocation2 + $0x98] sm:$0xff]
        %v612 = vld [vmem:[#allocation2 + $0xa0] sm:$0xff]
        %v613 = vld [vmem:[#allocation2 + $0xa8] sm:$0xff]
        %v614 = vld [vmem:[#allocation2 + $0xb0] sm:$0xff]
        %v615 = vld [vmem:[#allocation2 + $0xb8] sm:$0xff]
        %v616 = vld [vmem:[#allocation2 + $0xc0] sm:$0xff]
        %v617 = vld [vmem:[#allocation2 + $0xc8] sm:$0xff]
        %v618 = vld [vmem:[#allocation2 + $0xd0] sm:$0xff]
        %v619 = vld [vmem:[#allocation2 + $0xd8] sm:$0xff]
        %v620 = vld [vmem:[#allocation2 + $0xe0] sm:$0xff]
        %v621 = vld [vmem:[#allocation2 + $0xe8] sm:$0xff]
        %v622 = vld [vmem:[#allocation2 + $0xf0] sm:$0xff]
        %v623 = vld [vmem:[#allocation2 + $0xf8] sm:$0xff]
        %v624 = vld [vmem:[#allocation2 + $0x100] sm:$0xff]
        %v625 = vld [vmem:[#allocation2 + $0x108] sm:$0xff]
        %v626 = vld [vmem:[#allocation2 + $0x110] sm:$0xff]
        %v627 = vld [vmem:[#allocation2 + $0x118] sm:$0xff]
        %v628 = vld [vmem:[#allocation2 + $0x120] sm:$0xff]
        %v629 = vld [vmem:[#allocation2 + $0x128] sm:$0xff]
        %v630 = vld [vmem:[#allocation2 + $0x130] sm:$0xff]
        %v631 = vld [vmem:[#allocation2 + $0x138] sm:$0xff]
        %v632 = vld [vmem:[#allocation2 + $0x140] sm:$0xff]
        %v633 = vld [vmem:[#allocation2 + $0x148] sm:$0xff]
        %v634 = vld [vmem:[#allocation2 + $0x150] sm:$0xff]
        %v635 = vld [vmem:[#allocation2 + $0x158] sm:$0xff]
        %v636 = vld [vmem:[#allocation2 + $0x160] sm:$0xff]
        %v637 = vld [vmem:[#allocation2 + $0x168] sm:$0xff]
        %v638 = vld [vmem:[#allocation2 + $0x170] sm:$0xff]
        %v639 = vld [vmem:[#allocation2 + $0x178] sm:$0xff]
        %v640 = vld [vmem:[#allocation2 + $0x180] sm:$0xff]
        %v641 = vld [vmem:[#allocation2 + $0x188] sm:$0xff]
        %v642 = vld [vmem:[#allocation2 + $0x190] sm:$0xff]
        %v643 = vld [vmem:[#allocation2 + $0x198] sm:$0xff]
        %v644 = vld [vmem:[#allocation2 + $0x1a0] sm:$0xff]
        %v645 = vld [vmem:[#allocation2 + $0x1a8] sm:$0xff]
        %v646 = vld [vmem:[#allocation2 + $0x1b0] sm:$0xff]
        %v647 = vld [vmem:[#allocation2 + $0x1b8] sm:$0xff]
        %v648 = vld [vmem:[#allocation2 + $0x1c0] sm:$0xff]
        %v649 = vld [vmem:[#allocation2 + $0x1c8] sm:$0xff]
        %v650 = vld [vmem:[#allocation2 + $0x1d0] sm:$0xff]
        %v651 = vld [vmem:[#allocation2 + $0x1d8] sm:$0xff]
        %v652 = vld [vmem:[#allocation2 + $0x1e0] sm:$0xff]
        %v653 = vld [vmem:[#allocation2 + $0x1e8] sm:$0xff]
        %v654 = vld [vmem:[#allocation2 + $0x1f0] sm:$0xff]
        %v655 = vld [vmem:[#allocation2 + $0x1f8] sm:$0xff]
        %656 = vmatprep.subr.mxu0 %v465
        %657 = vmatpush1.xpose.msra.mxu0 %v464
        %658 = vmatprep.subr.mxu0 %v469
        %659 = vmatpush1.xpose.msra.mxu0 %v468
        %660 = vmatprep.subr.mxu0 %v473
        %661 = vmatpush1.xpose.msra.mxu0 %v472
        %662 = vmatprep.subr.mxu0 %v477
        %663 = vmatpush1.xpose.msra.mxu0 %v476
        %664 = vmatprep.subr.mxu0 %v481
        %665 = vmatpush1.xpose.msra.mxu0 %v480
        %666 = vmatprep.subr.mxu0 %v485
        %667 = vmatpush1.xpose.msra.mxu0 %v484
        %668 = vmatprep.subr.mxu0 %v489
        %669 = vmatpush1.xpose.msra.mxu0 %v488
        %670 = vmatprep.subr.mxu0 %v493
        %671 = vmatpush1.xpose.msra.mxu0 %v492
        %672 = vmatprep.subr.mxu0 %v497
        %673 = vmatpush1.xpose.msra.mxu0 %v496
        %674 = vmatprep.subr.mxu0 %v501
        %675 = vmatpush1.xpose.msra.mxu0 %v500
        %676 = vmatprep.subr.mxu0 %v505
        %677 = vmatpush1.xpose.msra.mxu0 %v504
        %678 = vmatprep.subr.mxu0 %v509
        %679 = vmatpush1.xpose.msra.mxu0 %v508
        %680 = vmatprep.subr.mxu0 %v513
        %681 = vmatpush1.xpose.msra.mxu0 %v512
        %682 = vmatprep.subr.mxu0 %v517
        %683 = vmatpush1.xpose.msra.mxu0 %v516
        %684 = vmatprep.subr.mxu0 %v521
        %685 = vmatpush1.xpose.msra.mxu0 %v520
        %686 = vmatprep.subr.mxu0 %v525
        %687 = vmatpush1.xpose.msra.mxu0 %v524
        %688 = vmatprep.subr.mxu0 %v529
        %689 = vmatpush1.xpose.msra.mxu0 %v528
        %690 = vmatprep.subr.mxu0 %v533
        %691 = vmatpush1.xpose.msra.mxu0 %v532
        %692 = vmatprep.subr.mxu0 %v537
        %693 = vmatpush1.xpose.msra.mxu0 %v536
        %694 = vmatprep.subr.mxu0 %v541
        %695 = vmatpush1.xpose.msra.mxu0 %v540
        %696 = vmatprep.subr.mxu0 %v545
        %697 = vmatpush1.xpose.msra.mxu0 %v544
        %698 = vmatprep.subr.mxu0 %v549
        %699 = vmatpush1.xpose.msra.mxu0 %v548
        %700 = vmatprep.subr.mxu0 %v553
        %701 = vmatpush1.xpose.msra.mxu0 %v552
        %702 = vmatprep.subr.mxu0 %v557
        %703 = vmatpush1.xpose.msra.mxu0 %v556
        %704 = vmatprep.subr.mxu0 %v561
        %705 = vmatpush1.xpose.msra.mxu0 %v560
        %706 = vmatprep.subr.mxu0 %v565
        %707 = vmatpush1.xpose.msra.mxu0 %v564
        %708 = vmatprep.subr.mxu0 %v569
        %709 = vmatpush1.xpose.msra.mxu0 %v568
        %710 = vmatprep.subr.mxu0 %v573
        %711 = vmatpush1.xpose.msra.mxu0 %v572
        %712 = vmatprep.subr.mxu0 %v577
        %713 = vmatpush1.xpose.msra.mxu0 %v576
        %714 = vmatprep.subr.mxu0 %v581
        %715 = vmatpush1.xpose.msra.mxu0 %v580
        %716 = vmatprep.subr.mxu0 %v585
        %717 = vmatpush1.xpose.msra.mxu0 %v584
        %718 = vmatprep.subr.mxu0 %v589
        %719 = vmatpush1.xpose.msra.mxu0 %v588
        %720 = vmatprep.mubr.f32.mxu0 %v337
        %721 = vmatmul.mubr.f32.gmra.mrb[0].mxu0 %v336
        %v722 = vpop.f32.mrb[0].mxu0
        %v723 = vadd.f32 0.0, %v722
        %v724 = vpop.f32.mrb[0].mxu0
        %v725 = vadd.f32 0.0, %v724
        %726 = vmatprep.mubr.f32.mxu0 %v341
        %727 = vmatmul.mubr.f32.gmra.mrb[0].mxu0 %v340
        %v728 = vpop.f32.mrb[0].mxu0
        %v729 = vadd.f32 0.0, %v728
        %v730 = vpop.f32.mrb[0].mxu0
        %v731 = vadd.f32 0.0, %v730
        %732 = vmatprep.mubr.f32.mxu0 %v345
        %733 = vmatmul.mubr.f32.gmra.mrb[0].mxu0 %v344
        %v734 = vpop.f32.mrb[0].mxu0
        %v735 = vadd.f32 0.0, %v734
        %v736 = vpop.f32.mrb[0].mxu0
        %v737 = vadd.f32 0.0, %v736
        %738 = vmatprep.mubr.f32.mxu0 %v349
        %739 = vmatmul.mubr.f32.gmra.mrb[0].mxu0 %v348
        %v740 = vpop.f32.mrb[0].mxu0
        %v741 = vadd.f32 0.0, %v740
        %v742 = vpop.f32.mrb[0].mxu0
        %v743 = vadd.f32 0.0, %v742
        %744 = vmatprep.mubr.f32.mxu0 %v353
        %745 = vmatmul.mubr.f32.gmra.mrb[0].mxu0 %v352
        %v746 = vpop.f32.mrb[0].mxu0
        %v747 = vadd.f32 0.0, %v746
        %v748 = vpop.f32.mrb[0].mxu0
        %v749 = vadd.f32 0.0, %v748
        %750 = vmatprep.mubr.f32.mxu0 %v357
        %751 = vmatmul.mubr.f32.gmra.mrb[0].mxu0 %v356
        %v752 = vpop.f32.mrb[0].mxu0
        %v753 = vadd.f32 0.0, %v752
        %v754 = vpop.f32.mrb[0].mxu0
        %v755 = vadd.f32 0.0, %v754
        %756 = vmatprep.mubr.f32.mxu0 %v361
        %757 = vmatmul.mubr.f32.gmra.mrb[0].mxu0 %v360
        %v758 = vpop.f32.mrb[0].mxu0
        %v759 = vadd.f32 0.0, %v758
        %v760 = vpop.f32.mrb[0].mxu0
        %v761 = vadd.f32 0.0, %v760
        %762 = vmatprep.mubr.f32.mxu0 %v365
        %763 = vmatmul.mubr.f32.gmra.mrb[0].mxu0 %v364
        %v764 = vpop.f32.mrb[0].mxu0
        %v765 = vadd.f32 0.0, %v764
        %v766 = vpop.f32.mrb[0].mxu0
        %v767 = vadd.f32 0.0, %v766
        %768 = vmatprep.mubr.f32.mxu0 %v369
        %769 = vmatmul.mubr.f32.gmra.mrb[0].mxu0 %v368
        %v770 = vpop.f32.mrb[0].mxu0
        %v771 = vadd.f32 0.0, %v770
        %v772 = vpop.f32.mrb[0].mxu0
        %v773 = vadd.f32 0.0, %v772
        %774 = vmatprep.mubr.f32.mxu0 %v373
        %775 = vmatmul.mubr.f32.gmra.mrb[0].mxu0 %v372
        %v776 = vpop.f32.mrb[0].mxu0
        %v777 = vadd.f32 0.0, %v776
        %v778 = vpop.f32.mrb[0].mxu0
        %v779 = vadd.f32 0.0, %v778
        %780 = vmatprep.mubr.f32.mxu0 %v377
        %781 = vmatmul.mubr.f32.gmra.mrb[0].mxu0 %v376
        %v782 = vpop.f32.mrb[0].mxu0
        %v783 = vadd.f32 0.0, %v782
        %v784 = vpop.f32.mrb[0].mxu0
        %v785 = vadd.f32 0.0, %v784
        %786 = vmatprep.mubr.f32.mxu0 %v381
        %787 = vmatmul.mubr.f32.gmra.mrb[0].mxu0 %v380
        %v788 = vpop.f32.mrb[0].mxu0
        %v789 = vadd.f32 0.0, %v788
        %v790 = vpop.f32.mrb[0].mxu0
        %v791 = vadd.f32 0.0, %v790
        %792 = vmatprep.mubr.f32.mxu0 %v385
        %793 = vmatmul.mubr.f32.gmra.mrb[0].mxu0 %v384
        %v794 = vpop.f32.mrb[0].mxu0
        %v795 = vadd.f32 0.0, %v794
        %v796 = vpop.f32.mrb[0].mxu0
        %v797 = vadd.f32 0.0, %v796
        %798 = vmatprep.mubr.f32.mxu0 %v389
        %799 = vmatmul.mubr.f32.gmra.mrb[0].mxu0 %v388
        %v800 = vpop.f32.mrb[0].mxu0
        %v801 = vadd.f32 0.0, %v800
        %v802 = vpop.f32.mrb[0].mxu0
        %v803 = vadd.f32 0.0, %v802
        %804 = vmatprep.mubr.f32.mxu0 %v393
        %805 = vmatmul.mubr.f32.gmra.mrb[0].mxu0 %v392
        %v806 = vpop.f32.mrb[0].mxu0
        %v807 = vadd.f32 0.0, %v806
        %v808 = vpop.f32.mrb[0].mxu0
        %v809 = vadd.f32 0.0, %v808
        %810 = vmatprep.mubr.f32.mxu0 %v397
        %811 = vmatmul.mubr.f32.gmra.mrb[0].mxu0 %v396
        %v812 = vpop.f32.mrb[0].mxu0
        %v813 = vadd.f32 0.0, %v812
        %v814 = vpop.f32.mrb[0].mxu0
        %v815 = vadd.f32 0.0, %v814
        %816 = vmatprep.mubr.f32.mxu0 %v401
        %817 = vmatmul.mubr.f32.gmra.mrb[0].mxu0 %v400
        %v818 = vpop.f32.mrb[0].mxu0
        %v819 = vadd.f32 0.0, %v818
        %v820 = vpop.f32.mrb[0].mxu0
        %v821 = vadd.f32 0.0, %v820
        %822 = vmatprep.mubr.f32.mxu0 %v405
        %823 = vmatmul.mubr.f32.gmra.mrb[0].mxu0 %v404
        %v824 = vpop.f32.mrb[0].mxu0
        %v825 = vadd.f32 0.0, %v824
        %v826 = vpop.f32.mrb[0].mxu0
        %v827 = vadd.f32 0.0, %v826
        %828 = vmatprep.mubr.f32.mxu0 %v409
        %829 = vmatmul.mubr.f32.gmra.mrb[0].mxu0 %v408
        %v830 = vpop.f32.mrb[0].mxu0
        %v831 = vadd.f32 0.0, %v830
        %v832 = vpop.f32.mrb[0].mxu0
        %v833 = vadd.f32 0.0, %v832
        %834 = vmatprep.mubr.f32.mxu0 %v413
        %835 = vmatmul.mubr.f32.gmra.mrb[0].mxu0 %v412
        %v836 = vpop.f32.mrb[0].mxu0
        %v837 = vadd.f32 0.0, %v836
        %v838 = vpop.f32.mrb[0].mxu0
        %v839 = vadd.f32 0.0, %v838
        %840 = vmatprep.mubr.f32.mxu0 %v417
        %841 = vmatmul.mubr.f32.gmra.mrb[0].mxu0 %v416
        %v842 = vpop.f32.mrb[0].mxu0
        %v843 = vadd.f32 0.0, %v842
        %v844 = vpop.f32.mrb[0].mxu0
        %v845 = vadd.f32 0.0, %v844
        %846 = vmatprep.mubr.f32.mxu0 %v421
        %847 = vmatmul.mubr.f32.gmra.mrb[0].mxu0 %v420
        %v848 = vpop.f32.mrb[0].mxu0
        %v849 = vadd.f32 0.0, %v848
        %v850 = vpop.f32.mrb[0].mxu0
        %v851 = vadd.f32 0.0, %v850
        %852 = vmatprep.mubr.f32.mxu0 %v425
        %853 = vmatmul.mubr.f32.gmra.mrb[0].mxu0 %v424
        %v854 = vpop.f32.mrb[0].mxu0
        %v855 = vadd.f32 0.0, %v854
        %v856 = vpop.f32.mrb[0].mxu0
        %v857 = vadd.f32 0.0, %v856
        %858 = vmatprep.mubr.f32.mxu0 %v429
        %859 = vmatmul.mubr.f32.gmra.mrb[0].mxu0 %v428
        %v860 = vpop.f32.mrb[0].mxu0
        %v861 = vadd.f32 0.0, %v860
        %v862 = vpop.f32.mrb[0].mxu0
        %v863 = vadd.f32 0.0, %v862
        %864 = vmatprep.mubr.f32.mxu0 %v433
        %865 = vmatmul.mubr.f32.gmra.mrb[0].mxu0 %v432
        %v866 = vpop.f32.mrb[0].mxu0
        %v867 = vadd.f32 0.0, %v866
        %v868 = vpop.f32.mrb[0].mxu0
        %v869 = vadd.f32 0.0, %v868
        %870 = vmatprep.mubr.f32.mxu0 %v437
        %871 = vmatmul.mubr.f32.gmra.mrb[0].mxu0 %v436
        %v872 = vpop.f32.mrb[0].mxu0
        %v873 = vadd.f32 0.0, %v872
        %v874 = vpop.f32.mrb[0].mxu0
        %v875 = vadd.f32 0.0, %v874
        %876 = vmatprep.mubr.f32.mxu0 %v441
        %877 = vmatmul.mubr.f32.gmra.mrb[0].mxu0 %v440
        %v878 = vpop.f32.mrb[0].mxu0
        %v879 = vadd.f32 0.0, %v878
        %v880 = vpop.f32.mrb[0].mxu0
        %v881 = vadd.f32 0.0, %v880
        %882 = vmatprep.mubr.f32.mxu0 %v445
        %883 = vmatmul.mubr.f32.gmra.mrb[0].mxu0 %v444
        %v884 = vpop.f32.mrb[0].mxu0
        %v885 = vadd.f32 0.0, %v884
        %v886 = vpop.f32.mrb[0].mxu0
        %v887 = vadd.f32 0.0, %v886
        %888 = vmatprep.mubr.f32.mxu0 %v449
        %889 = vmatmul.mubr.f32.gmra.mrb[0].mxu0 %v448
        %v890 = vpop.f32.mrb[0].mxu0
        %v891 = vadd.f32 0.0, %v890
        %v892 = vpop.f32.mrb[0].mxu0
        %v893 = vadd.f32 0.0, %v892
        %894 = vmatprep.mubr.f32.mxu0 %v453
        %895 = vmatmul.mubr.f32.gmra.mrb[0].mxu0 %v452
        %v896 = vpop.f32.mrb[0].mxu0
        %v897 = vadd.f32 0.0, %v896
        %v898 = vpop.f32.mrb[0].mxu0
        %v899 = vadd.f32 0.0, %v898
        %900 = vmatprep.mubr.f32.mxu0 %v457
        %901 = vmatmul.mubr.f32.gmra.mrb[0].mxu0 %v456
        %v902 = vpop.f32.mrb[0].mxu0
        %v903 = vadd.f32 0.0, %v902
        %v904 = vpop.f32.mrb[0].mxu0
        %v905 = vadd.f32 0.0, %v904
        %906 = vmatprep.mubr.f32.mxu0 %v461
        %907 = vmatmul.mubr.f32.gmra.mrb[0].mxu0 %v460
        %v908 = vpop.f32.mrb[0].mxu0
        %v909 = vadd.f32 0.0, %v908
        %v910 = vpop.f32.mrb[0].mxu0
        %v911 = vadd.f32 0.0, %v910
        %912 = vdwg.mxu0
        %913 = vmatprep.subr.mxu0 %v467
        %914 = vmatpush1.xpose.msra.mxu0 %v466
        %915 = vmatprep.subr.mxu0 %v471
        %916 = vmatpush1.xpose.msra.mxu0 %v470
        %917 = vmatprep.subr.mxu0 %v475
        %918 = vmatpush1.xpose.msra.mxu0 %v474
        %919 = vmatprep.subr.mxu0 %v479
        %920 = vmatpush1.xpose.msra.mxu0 %v478
        %921 = vmatprep.subr.mxu0 %v483
        %922 = vmatpush1.xpose.msra.mxu0 %v482
        %923 = vmatprep.subr.mxu0 %v487
        %924 = vmatpush1.xpose.msra.mxu0 %v486
        %925 = vmatprep.subr.mxu0 %v491
        %926 = vmatpush1.xpose.msra.mxu0 %v490
        %927 = vmatprep.subr.mxu0 %v495
        %928 = vmatpush1.xpose.msra.mxu0 %v494
        %929 = vmatprep.subr.mxu0 %v499
        %930 = vmatpush1.xpose.msra.mxu0 %v498
        %931 = vmatprep.subr.mxu0 %v503
        %932 = vmatpush1.xpose.msra.mxu0 %v502
        %933 = vmatprep.subr.mxu0 %v507
        %934 = vmatpush1.xpose.msra.mxu0 %v506
        %935 = vmatprep.subr.mxu0 %v511
        %936 = vmatpush1.xpose.msra.mxu0 %v510
        %937 = vmatprep.subr.mxu0 %v515
        %938 = vmatpush1.xpose.msra.mxu0 %v514
        %939 = vmatprep.subr.mxu0 %v519
        %940 = vmatpush1.xpose.msra.mxu0 %v518
        %941 = vmatprep.subr.mxu0 %v523
        %942 = vmatpush1.xpose.msra.mxu0 %v522
        %943 = vmatprep.subr.mxu0 %v527
        %944 = vmatpush1.xpose.msra.mxu0 %v526
        %945 = vmatprep.subr.mxu0 %v531
        %946 = vmatpush1.xpose.msra.mxu0 %v530
        %947 = vmatprep.subr.mxu0 %v535
        %948 = vmatpush1.xpose.msra.mxu0 %v534
        %949 = vmatprep.subr.mxu0 %v539
        %950 = vmatpush1.xpose.msra.mxu0 %v538
        %951 = vmatprep.subr.mxu0 %v543
        %952 = vmatpush1.xpose.msra.mxu0 %v542
        %953 = vmatprep.subr.mxu0 %v547
        %954 = vmatpush1.xpose.msra.mxu0 %v546
        %955 = vmatprep.subr.mxu0 %v551
        %956 = vmatpush1.xpose.msra.mxu0 %v550
        %957 = vmatprep.subr.mxu0 %v555
        %958 = vmatpush1.xpose.msra.mxu0 %v554
        %959 = vmatprep.subr.mxu0 %v559
        %960 = vmatpush1.xpose.msra.mxu0 %v558
        %961 = vmatprep.subr.mxu0 %v563
        %962 = vmatpush1.xpose.msra.mxu0 %v562
        %963 = vmatprep.subr.mxu0 %v567
        %964 = vmatpush1.xpose.msra.mxu0 %v566
        %965 = vmatprep.subr.mxu0 %v571
        %966 = vmatpush1.xpose.msra.mxu0 %v570
        %967 = vmatprep.subr.mxu0 %v575
        %968 = vmatpush1.xpose.msra.mxu0 %v574
        %969 = vmatprep.subr.mxu0 %v579
        %970 = vmatpush1.xpose.msra.mxu0 %v578
        %971 = vmatprep.subr.mxu0 %v583
        %972 = vmatpush1.xpose.msra.mxu0 %v582
        %973 = vmatprep.subr.mxu0 %v587
        %974 = vmatpush1.xpose.msra.mxu0 %v586
        %975 = vmatprep.subr.mxu0 %v591
        %976 = vmatpush1.xpose.msra.mxu0 %v590
        %977 = vmatprep.mubr.f32.mxu0 %v339
        %978 = vmatmul.mubr.f32.gmra.mrb[0].mxu0 %v338
        %v979 = vpop.f32.mrb[0].mxu0
        %v980 = vadd.f32 %v723, %v979
        %v981 = vpop.f32.mrb[0].mxu0
        %v982 = vadd.f32 %v725, %v981
        %983 = vmatprep.mubr.f32.mxu0 %v343
        %984 = vmatmul.mubr.f32.gmra.mrb[0].mxu0 %v342
        %v985 = vpop.f32.mrb[0].mxu0
        %v986 = vadd.f32 %v729, %v985
        %v987 = vpop.f32.mrb[0].mxu0
        %v988 = vadd.f32 %v731, %v987
        %989 = vmatprep.mubr.f32.mxu0 %v347
        %990 = vmatmul.mubr.f32.gmra.mrb[0].mxu0 %v346
        %v991 = vpop.f32.mrb[0].mxu0
        %v992 = vadd.f32 %v735, %v991
        %v993 = vpop.f32.mrb[0].mxu0
        %v994 = vadd.f32 %v737, %v993
        %995 = vmatprep.mubr.f32.mxu0 %v351
        %996 = vmatmul.mubr.f32.gmra.mrb[0].mxu0 %v350
        %v997 = vpop.f32.mrb[0].mxu0
        %v998 = vadd.f32 %v741, %v997
        %v999 = vpop.f32.mrb[0].mxu0
        %v1000 = vadd.f32 %v743, %v999
        %1001 = vmatprep.mubr.f32.mxu0 %v355
        %1002 = vmatmul.mubr.f32.gmra.mrb[0].mxu0 %v354
        %v1003 = vpop.f32.mrb[0].mxu0
        %v1004 = vadd.f32 %v747, %v1003
        %v1005 = vpop.f32.mrb[0].mxu0
        %v1006 = vadd.f32 %v749, %v1005
        %1007 = vmatprep.mubr.f32.mxu0 %v359
        %1008 = vmatmul.mubr.f32.gmra.mrb[0].mxu0 %v358
        %v1009 = vpop.f32.mrb[0].mxu0
        %v1010 = vadd.f32 %v753, %v1009
        %v1011 = vpop.f32.mrb[0].mxu0
        %v1012 = vadd.f32 %v755, %v1011
        %1013 = vmatprep.mubr.f32.mxu0 %v363
        %1014 = vmatmul.mubr.f32.gmra.mrb[0].mxu0 %v362
        %v1015 = vpop.f32.mrb[0].mxu0
        %v1016 = vadd.f32 %v759, %v1015
        %v1017 = vpop.f32.mrb[0].mxu0
        %v1018 = vadd.f32 %v761, %v1017
        %1019 = vmatprep.mubr.f32.mxu0 %v367
        %1020 = vmatmul.mubr.f32.gmra.mrb[0].mxu0 %v366
        %v1021 = vpop.f32.mrb[0].mxu0
        %v1022 = vadd.f32 %v765, %v1021
        %v1023 = vpop.f32.mrb[0].mxu0
        %v1024 = vadd.f32 %v767, %v1023
        %1025 = vmatprep.mubr.f32.mxu0 %v371
        %1026 = vmatmul.mubr.f32.gmra.mrb[0].mxu0 %v370
        %v1027 = vpop.f32.mrb[0].mxu0
        %v1028 = vadd.f32 %v771, %v1027
        %v1029 = vpop.f32.mrb[0].mxu0
        %v1030 = vadd.f32 %v773, %v1029
        %1031 = vmatprep.mubr.f32.mxu0 %v375
        %1032 = vmatmul.mubr.f32.gmra.mrb[0].mxu0 %v374
        %v1033 = vpop.f32.mrb[0].mxu0
        %v1034 = vadd.f32 %v777, %v1033
        %v1035 = vpop.f32.mrb[0].mxu0
        %v1036 = vadd.f32 %v779, %v1035
        %1037 = vmatprep.mubr.f32.mxu0 %v379
        %1038 = vmatmul.mubr.f32.gmra.mrb[0].mxu0 %v378
        %v1039 = vpop.f32.mrb[0].mxu0
        %v1040 = vadd.f32 %v783, %v1039
        %v1041 = vpop.f32.mrb[0].mxu0
        %v1042 = vadd.f32 %v785, %v1041
        %1043 = vmatprep.mubr.f32.mxu0 %v383
        %1044 = vmatmul.mubr.f32.gmra.mrb[0].mxu0 %v382
        %v1045 = vpop.f32.mrb[0].mxu0
        %v1046 = vadd.f32 %v789, %v1045
        %v1047 = vpop.f32.mrb[0].mxu0
        %v1048 = vadd.f32 %v791, %v1047
        %1049 = vmatprep.mubr.f32.mxu0 %v387
        %1050 = vmatmul.mubr.f32.gmra.mrb[0].mxu0 %v386
        %v1051 = vpop.f32.mrb[0].mxu0
        %v1052 = vadd.f32 %v795, %v1051
        %v1053 = vpop.f32.mrb[0].mxu0
        %v1054 = vadd.f32 %v797, %v1053
        %1055 = vmatprep.mubr.f32.mxu0 %v391
        %1056 = vmatmul.mubr.f32.gmra.mrb[0].mxu0 %v390
        %v1057 = vpop.f32.mrb[0].mxu0
        %v1058 = vadd.f32 %v801, %v1057
        %v1059 = vpop.f32.mrb[0].mxu0
        %v1060 = vadd.f32 %v803, %v1059
        %1061 = vmatprep.mubr.f32.mxu0 %v395
        %1062 = vmatmul.mubr.f32.gmra.mrb[0].mxu0 %v394
        %v1063 = vpop.f32.mrb[0].mxu0
        %v1064 = vadd.f32 %v807, %v1063
        %v1065 = vpop.f32.mrb[0].mxu0
        %v1066 = vadd.f32 %v809, %v1065
        %1067 = vmatprep.mubr.f32.mxu0 %v399
        %1068 = vmatmul.mubr.f32.gmra.mrb[0].mxu0 %v398
        %v1069 = vpop.f32.mrb[0].mxu0
        %v1070 = vadd.f32 %v813, %v1069
        %v1071 = vpop.f32.mrb[0].mxu0
        %v1072 = vadd.f32 %v815, %v1071
        %1073 = vmatprep.mubr.f32.mxu0 %v403
        %1074 = vmatmul.mubr.f32.gmra.mrb[0].mxu0 %v402
        %v1075 = vpop.f32.mrb[0].mxu0
        %v1076 = vadd.f32 %v819, %v1075
        %v1077 = vpop.f32.mrb[0].mxu0
        %v1078 = vadd.f32 %v821, %v1077
        %1079 = vmatprep.mubr.f32.mxu0 %v407
        %1080 = vmatmul.mubr.f32.gmra.mrb[0].mxu0 %v406
        %v1081 = vpop.f32.mrb[0].mxu0
        %v1082 = vadd.f32 %v825, %v1081
        %v1083 = vpop.f32.mrb[0].mxu0
        %v1084 = vadd.f32 %v827, %v1083
        %1085 = vmatprep.mubr.f32.mxu0 %v411
        %1086 = vmatmul.mubr.f32.gmra.mrb[0].mxu0 %v410
        %v1087 = vpop.f32.mrb[0].mxu0
        %v1088 = vadd.f32 %v831, %v1087
        %v1089 = vpop.f32.mrb[0].mxu0
        %v1090 = vadd.f32 %v833, %v1089
        %1091 = vmatprep.mubr.f32.mxu0 %v415
        %1092 = vmatmul.mubr.f32.gmra.mrb[0].mxu0 %v414
        %v1093 = vpop.f32.mrb[0].mxu0
        %v1094 = vadd.f32 %v837, %v1093
        %v1095 = vpop.f32.mrb[0].mxu0
        %v1096 = vadd.f32 %v839, %v1095
        %1097 = vmatprep.mubr.f32.mxu0 %v419
        %1098 = vmatmul.mubr.f32.gmra.mrb[0].mxu0 %v418
        %v1099 = vpop.f32.mrb[0].mxu0
        %v1100 = vadd.f32 %v843, %v1099
        %v1101 = vpop.f32.mrb[0].mxu0
        %v1102 = vadd.f32 %v845, %v1101
        %1103 = vmatprep.mubr.f32.mxu0 %v423
        %1104 = vmatmul.mubr.f32.gmra.mrb[0].mxu0 %v422
        %v1105 = vpop.f32.mrb[0].mxu0
        %v1106 = vadd.f32 %v849, %v1105
        %v1107 = vpop.f32.mrb[0].mxu0
        %v1108 = vadd.f32 %v851, %v1107
        %1109 = vmatprep.mubr.f32.mxu0 %v427
        %1110 = vmatmul.mubr.f32.gmra.mrb[0].mxu0 %v426
        %v1111 = vpop.f32.mrb[0].mxu0
        %v1112 = vadd.f32 %v855, %v1111
        %v1113 = vpop.f32.mrb[0].mxu0
        %v1114 = vadd.f32 %v857, %v1113
        %1115 = vmatprep.mubr.f32.mxu0 %v431
        %1116 = vmatmul.mubr.f32.gmra.mrb[0].mxu0 %v430
        %v1117 = vpop.f32.mrb[0].mxu0
        %v1118 = vadd.f32 %v861, %v1117
        %v1119 = vpop.f32.mrb[0].mxu0
        %v1120 = vadd.f32 %v863, %v1119
        %1121 = vmatprep.mubr.f32.mxu0 %v435
        %1122 = vmatmul.mubr.f32.gmra.mrb[0].mxu0 %v434
        %v1123 = vpop.f32.mrb[0].mxu0
        %v1124 = vadd.f32 %v867, %v1123
        %v1125 = vpop.f32.mrb[0].mxu0
        %v1126 = vadd.f32 %v869, %v1125
        %1127 = vmatprep.mubr.f32.mxu0 %v439
        %1128 = vmatmul.mubr.f32.gmra.mrb[0].mxu0 %v438
        %v1129 = vpop.f32.mrb[0].mxu0
        %v1130 = vadd.f32 %v873, %v1129
        %v1131 = vpop.f32.mrb[0].mxu0
        %v1132 = vadd.f32 %v875, %v1131
        %1133 = vmatprep.mubr.f32.mxu0 %v443
        %1134 = vmatmul.mubr.f32.gmra.mrb[0].mxu0 %v442
        %v1135 = vpop.f32.mrb[0].mxu0
        %v1136 = vadd.f32 %v879, %v1135
        %v1137 = vpop.f32.mrb[0].mxu0
        %v1138 = vadd.f32 %v881, %v1137
        %1139 = vmatprep.mubr.f32.mxu0 %v447
        %1140 = vmatmul.mubr.f32.gmra.mrb[0].mxu0 %v446
        %v1141 = vpop.f32.mrb[0].mxu0
        %v1142 = vadd.f32 %v885, %v1141
        %v1143 = vpop.f32.mrb[0].mxu0
        %v1144 = vadd.f32 %v887, %v1143
        %1145 = vmatprep.mubr.f32.mxu0 %v451
        %1146 = vmatmul.mubr.f32.gmra.mrb[0].mxu0 %v450
        %v1147 = vpop.f32.mrb[0].mxu0
        %v1148 = vadd.f32 %v891, %v1147
        %v1149 = vpop.f32.mrb[0].mxu0
        %v1150 = vadd.f32 %v893, %v1149
        %1151 = vmatprep.mubr.f32.mxu0 %v455
        %1152 = vmatmul.mubr.f32.gmra.mrb[0].mxu0 %v454
        %v1153 = vpop.f32.mrb[0].mxu0
        %v1154 = vadd.f32 %v897, %v1153
        %v1155 = vpop.f32.mrb[0].mxu0
        %v1156 = vadd.f32 %v899, %v1155
        %1157 = vmatprep.mubr.f32.mxu0 %v459
        %1158 = vmatmul.mubr.f32.gmra.mrb[0].mxu0 %v458
        %v1159 = vpop.f32.mrb[0].mxu0
        %v1160 = vadd.f32 %v903, %v1159
        %v1161 = vpop.f32.mrb[0].mxu0
        %v1162 = vadd.f32 %v905, %v1161
        %1163 = vmatprep.mubr.f32.mxu0 %v463
        %1164 = vmatmul.mubr.f32.gmra.mrb[0].mxu0 %v462
        %v1165 = vpop.f32.mrb[0].mxu0
        %v1166 = vadd.f32 %v909, %v1165
        %v1167 = vpop.f32.mrb[0].mxu0
        %v1168 = vadd.f32 %v911, %v1167
        %1169 = vdwg.mxu0
        %v1170 = vadd.f32 %v592, %v980
        %v1171 = vadd.f32 %v593, %v982
        %v1172 = vadd.f32 %v594, %v986
        %v1173 = vadd.f32 %v595, %v988
        %v1174 = vadd.f32 %v596, %v992
        %v1175 = vadd.f32 %v597, %v994
        %v1176 = vadd.f32 %v598, %v998
        %v1177 = vadd.f32 %v599, %v1000
        %v1178 = vadd.f32 %v600, %v1004
        %v1179 = vadd.f32 %v601, %v1006
        %v1180 = vadd.f32 %v602, %v1010
        %v1181 = vadd.f32 %v603, %v1012
        %v1182 = vadd.f32 %v604, %v1016
        %v1183 = vadd.f32 %v605, %v1018
        %v1184 = vadd.f32 %v606, %v1022
        %v1185 = vadd.f32 %v607, %v1024
        %v1186 = vadd.f32 %v608, %v1028
        %v1187 = vadd.f32 %v609, %v1030
        %v1188 = vadd.f32 %v610, %v1034
        %v1189 = vadd.f32 %v611, %v1036
        %v1190 = vadd.f32 %v612, %v1040
        %v1191 = vadd.f32 %v613, %v1042
        %v1192 = vadd.f32 %v614, %v1046
        %v1193 = vadd.f32 %v615, %v1048
        %v1194 = vadd.f32 %v616, %v1052
        %v1195 = vadd.f32 %v617, %v1054
        %v1196 = vadd.f32 %v618, %v1058
        %v1197 = vadd.f32 %v619, %v1060
        %v1198 = vadd.f32 %v620, %v1064
        %v1199 = vadd.f32 %v621, %v1066
        %v1200 = vadd.f32 %v622, %v1070
        %v1201 = vadd.f32 %v623, %v1072
        %v1202 = vadd.f32 %v624, %v1076
        %v1203 = vadd.f32 %v625, %v1078
        %v1204 = vadd.f32 %v626, %v1082
        %v1205 = vadd.f32 %v627, %v1084
        %v1206 = vadd.f32 %v628, %v1088
        %v1207 = vadd.f32 %v629, %v1090
        %v1208 = vadd.f32 %v630, %v1094
        %v1209 = vadd.f32 %v631, %v1096
        %v1210 = vadd.f32 %v632, %v1100
        %v1211 = vadd.f32 %v633, %v1102
        %v1212 = vadd.f32 %v634, %v1106
        %v1213 = vadd.f32 %v635, %v1108
        %v1214 = vadd.f32 %v636, %v1112
        %v1215 = vadd.f32 %v637, %v1114
        %v1216 = vadd.f32 %v638, %v1118
        %v1217 = vadd.f32 %v639, %v1120
        %v1218 = vadd.f32 %v640, %v1124
        %v1219 = vadd.f32 %v641, %v1126
        %v1220 = vadd.f32 %v642, %v1130
        %v1221 = vadd.f32 %v643, %v1132
        %v1222 = vadd.f32 %v644, %v1136
        %v1223 = vadd.f32 %v645, %v1138
        %v1224 = vadd.f32 %v646, %v1142
        %v1225 = vadd.f32 %v647, %v1144
        %v1226 = vadd.f32 %v648, %v1148
        %v1227 = vadd.f32 %v649, %v1150
        %v1228 = vadd.f32 %v650, %v1154
        %v1229 = vadd.f32 %v651, %v1156
        %v1230 = vadd.f32 %v652, %v1160
        %v1231 = vadd.f32 %v653, %v1162
        %v1232 = vadd.f32 %v654, %v1166
        %v1233 = vadd.f32 %v655, %v1168
        %1234 = vst [vmem:[#allocation2] sm:$0xff] %v1170
        %1235 = vst [vmem:[#allocation2 + $0x8] sm:$0xff] %v1171
        %1236 = vst [vmem:[#allocation2 + $0x10] sm:$0xff] %v1172
        %1237 = vst [vmem:[#allocation2 + $0x18] sm:$0xff] %v1173
        %1238 = vst [vmem:[#allocation2 + $0x20] sm:$0xff] %v1174
        %1239 = vst [vmem:[#allocation2 + $0x28] sm:$0xff] %v1175
        %1240 = vst [vmem:[#allocation2 + $0x30] sm:$0xff] %v1176
        %1241 = vst [vmem:[#allocation2 + $0x38] sm:$0xff] %v1177
        %1242 = vst [vmem:[#allocation2 + $0x40] sm:$0xff] %v1178
        %1243 = vst [vmem:[#allocation2 + $0x48] sm:$0xff] %v1179
        %1244 = vst [vmem:[#allocation2 + $0x50] sm:$0xff] %v1180
        %1245 = vst [vmem:[#allocation2 + $0x58] sm:$0xff] %v1181
        %1246 = vst [vmem:[#allocation2 + $0x60] sm:$0xff] %v1182
        %1247 = vst [vmem:[#allocation2 + $0x68] sm:$0xff] %v1183
        %1248 = vst [vmem:[#allocation2 + $0x70] sm:$0xff] %v1184
        %1249 = vst [vmem:[#allocation2 + $0x78] sm:$0xff] %v1185
        %1250 = vst [vmem:[#allocation2 + $0x80] sm:$0xff] %v1186
        %1251 = vst [vmem:[#allocation2 + $0x88] sm:$0xff] %v1187
        %1252 = vst [vmem:[#allocation2 + $0x90] sm:$0xff] %v1188
        %1253 = vst [vmem:[#allocation2 + $0x98] sm:$0xff] %v1189
        %1254 = vst [vmem:[#allocation2 + $0xa0] sm:$0xff] %v1190
        %1255 = vst [vmem:[#allocation2 + $0xa8] sm:$0xff] %v1191
        %1256 = vst [vmem:[#allocation2 + $0xb0] sm:$0xff] %v1192
        %1257 = vst [vmem:[#allocation2 + $0xb8] sm:$0xff] %v1193
        %1258 = vst [vmem:[#allocation2 + $0xc0] sm:$0xff] %v1194
        %1259 = vst [vmem:[#allocation2 + $0xc8] sm:$0xff] %v1195
        %1260 = vst [vmem:[#allocation2 + $0xd0] sm:$0xff] %v1196
        %1261 = vst [vmem:[#allocation2 + $0xd8] sm:$0xff] %v1197
        %1262 = vst [vmem:[#allocation2 + $0xe0] sm:$0xff] %v1198
        %1263 = vst [vmem:[#allocation2 + $0xe8] sm:$0xff] %v1199
        %1264 = vst [vmem:[#allocation2 + $0xf0] sm:$0xff] %v1200
        %1265 = vst [vmem:[#allocation2 + $0xf8] sm:$0xff] %v1201
        %1266 = vst [vmem:[#allocation2 + $0x100] sm:$0xff] %v1202
        %1267 = vst [vmem:[#allocation2 + $0x108] sm:$0xff] %v1203
        %1268 = vst [vmem:[#allocation2 + $0x110] sm:$0xff] %v1204
        %1269 = vst [vmem:[#allocation2 + $0x118] sm:$0xff] %v1205
        %1270 = vst [vmem:[#allocation2 + $0x120] sm:$0xff] %v1206
        %1271 = vst [vmem:[#allocation2 + $0x128] sm:$0xff] %v1207
        %1272 = vst [vmem:[#allocation2 + $0x130] sm:$0xff] %v1208
        %1273 = vst [vmem:[#allocation2 + $0x138] sm:$0xff] %v1209
        %1274 = vst [vmem:[#allocation2 + $0x140] sm:$0xff] %v1210
        %1275 = vst [vmem:[#allocation2 + $0x148] sm:$0xff] %v1211
        %1276 = vst [vmem:[#allocation2 + $0x150] sm:$0xff] %v1212
        %1277 = vst [vmem:[#allocation2 + $0x158] sm:$0xff] %v1213
        %1278 = vst [vmem:[#allocation2 + $0x160] sm:$0xff] %v1214
        %1279 = vst [vmem:[#allocation2 + $0x168] sm:$0xff] %v1215
        %1280 = vst [vmem:[#allocation2 + $0x170] sm:$0xff] %v1216
        %1281 = vst [vmem:[#allocation2 + $0x178] sm:$0xff] %v1217
        %1282 = vst [vmem:[#allocation2 + $0x180] sm:$0xff] %v1218
        %1283 = vst [vmem:[#allocation2 + $0x188] sm:$0xff] %v1219
        %1284 = vst [vmem:[#allocation2 + $0x190] sm:$0xff] %v1220
        %1285 = vst [vmem:[#allocation2 + $0x198] sm:$0xff] %v1221
        %1286 = vst [vmem:[#allocation2 + $0x1a0] sm:$0xff] %v1222
        %1287 = vst [vmem:[#allocation2 + $0x1a8] sm:$0xff] %v1223
        %1288 = vst [vmem:[#allocation2 + $0x1b0] sm:$0xff] %v1224
        %1289 = vst [vmem:[#allocation2 + $0x1b8] sm:$0xff] %v1225
        %1290 = vst [vmem:[#allocation2 + $0x1c0] sm:$0xff] %v1226
        %1291 = vst [vmem:[#allocation2 + $0x1c8] sm:$0xff] %v1227
        %1292 = vst [vmem:[#allocation2 + $0x1d0] sm:$0xff] %v1228
        %1293 = vst [vmem:[#allocation2 + $0x1d8] sm:$0xff] %v1229
        %1294 = vst [vmem:[#allocation2 + $0x1e0] sm:$0xff] %v1230
        %1295 = vst [vmem:[#allocation2 + $0x1e8] sm:$0xff] %v1231
        %1296 = vst [vmem:[#allocation2 + $0x1f0] sm:$0xff] %v1232
        %1297 = vst [vmem:[#allocation2 + $0x1f8] sm:$0xff] %v1233
        // Predicated region
        $region45: #{tpu_custom_call.1} parent=31 // pred_check
          %p1298 = pneg %p268
        $region46: #{tpu_custom_call.1} parent=31 // pred_check_branch
          %1300 = sbr.rel (%p1298) target = $region48
        $region47: #{tpu_custom_call.1} parent=31 // pred_region
          %v1301 = vld [vmem:[#allocation2] sm:$0xff]
          %v1302 = vld [vmem:[#allocation2 + $0x8] sm:$0xff]
          %v1303 = vld [vmem:[#allocation2 + $0x10] sm:$0xff]
          %v1304 = vld [vmem:[#allocation2 + $0x18] sm:$0xff]
          %v1305 = vld [vmem:[#allocation2 + $0x20] sm:$0xff]
          %v1306 = vld [vmem:[#allocation2 + $0x28] sm:$0xff]
          %v1307 = vld [vmem:[#allocation2 + $0x30] sm:$0xff]
          %v1308 = vld [vmem:[#allocation2 + $0x38] sm:$0xff]
          %v1309 = vld [vmem:[#allocation2 + $0x40] sm:$0xff]
          %v1310 = vld [vmem:[#allocation2 + $0x48] sm:$0xff]
          %v1311 = vld [vmem:[#allocation2 + $0x50] sm:$0xff]
          %v1312 = vld [vmem:[#allocation2 + $0x58] sm:$0xff]
          %v1313 = vld [vmem:[#allocation2 + $0x60] sm:$0xff]
          %v1314 = vld [vmem:[#allocation2 + $0x68] sm:$0xff]
          %v1315 = vld [vmem:[#allocation2 + $0x70] sm:$0xff]
          %v1316 = vld [vmem:[#allocation2 + $0x78] sm:$0xff]
          %v1317 = vld [vmem:[#allocation2 + $0x80] sm:$0xff]
          %v1318 = vld [vmem:[#allocation2 + $0x88] sm:$0xff]
          %v1319 = vld [vmem:[#allocation2 + $0x90] sm:$0xff]
          %v1320 = vld [vmem:[#allocation2 + $0x98] sm:$0xff]
          %v1321 = vld [vmem:[#allocation2 + $0xa0] sm:$0xff]
          %v1322 = vld [vmem:[#allocation2 + $0xa8] sm:$0xff]
          %v1323 = vld [vmem:[#allocation2 + $0xb0] sm:$0xff]
          %v1324 = vld [vmem:[#allocation2 + $0xb8] sm:$0xff]
          %v1325 = vld [vmem:[#allocation2 + $0xc0] sm:$0xff]
          %v1326 = vld [vmem:[#allocation2 + $0xc8] sm:$0xff]
          %v1327 = vld [vmem:[#allocation2 + $0xd0] sm:$0xff]
          %v1328 = vld [vmem:[#allocation2 + $0xd8] sm:$0xff]
          %v1329 = vld [vmem:[#allocation2 + $0xe0] sm:$0xff]
          %v1330 = vld [vmem:[#allocation2 + $0xe8] sm:$0xff]
          %v1331 = vld [vmem:[#allocation2 + $0xf0] sm:$0xff]
          %v1332 = vld [vmem:[#allocation2 + $0xf8] sm:$0xff]
          %v1333 = vld [vmem:[#allocation2 + $0x100] sm:$0xff]
          %v1334 = vld [vmem:[#allocation2 + $0x108] sm:$0xff]
          %v1335 = vld [vmem:[#allocation2 + $0x110] sm:$0xff]
          %v1336 = vld [vmem:[#allocation2 + $0x118] sm:$0xff]
          %v1337 = vld [vmem:[#allocation2 + $0x120] sm:$0xff]
          %v1338 = vld [vmem:[#allocation2 + $0x128] sm:$0xff]
          %v1339 = vld [vmem:[#allocation2 + $0x130] sm:$0xff]
          %v1340 = vld [vmem:[#allocation2 + $0x138] sm:$0xff]
          %v1341 = vld [vmem:[#allocation2 + $0x140] sm:$0xff]
          %v1342 = vld [vmem:[#allocation2 + $0x148] sm:$0xff]
          %v1343 = vld [vmem:[#allocation2 + $0x150] sm:$0xff]
          %v1344 = vld [vmem:[#allocation2 + $0x158] sm:$0xff]
          %v1345 = vld [vmem:[#allocation2 + $0x160] sm:$0xff]
          %v1346 = vld [vmem:[#allocation2 + $0x168] sm:$0xff]
          %v1347 = vld [vmem:[#allocation2 + $0x170] sm:$0xff]
          %v1348 = vld [vmem:[#allocation2 + $0x178] sm:$0xff]
          %v1349 = vld [vmem:[#allocation2 + $0x180] sm:$0xff]
          %v1350 = vld [vmem:[#allocation2 + $0x188] sm:$0xff]
          %v1351 = vld [vmem:[#allocation2 + $0x190] sm:$0xff]
          %v1352 = vld [vmem:[#allocation2 + $0x198] sm:$0xff]
          %v1353 = vld [vmem:[#allocation2 + $0x1a0] sm:$0xff]
          %v1354 = vld [vmem:[#allocation2 + $0x1a8] sm:$0xff]
          %v1355 = vld [vmem:[#allocation2 + $0x1b0] sm:$0xff]
          %v1356 = vld [vmem:[#allocation2 + $0x1b8] sm:$0xff]
          %v1357 = vld [vmem:[#allocation2 + $0x1c0] sm:$0xff]
          %v1358 = vld [vmem:[#allocation2 + $0x1c8] sm:$0xff]
          %v1359 = vld [vmem:[#allocation2 + $0x1d0] sm:$0xff]
          %v1360 = vld [vmem:[#allocation2 + $0x1d8] sm:$0xff]
          %v1361 = vld [vmem:[#allocation2 + $0x1e0] sm:$0xff]
          %v1362 = vld [vmem:[#allocation2 + $0x1e8] sm:$0xff]
          %v1363 = vld [vmem:[#allocation2 + $0x1f0] sm:$0xff]
          %v1364 = vld [vmem:[#allocation2 + $0x1f8] sm:$0xff]
          %v1365 = vld [vmem:[%s264] sm:$0x3]
          %v1367 = vlaneseq
          %v1368 = vshrl.u32 %v1367, 7
          %v1369 = vsub.s32 0, %v1368
          %v1370 = vrot.slane %v1365, %v1369
          %v1371 = vlaneseq
          %v1372 = vshrl.u32 %v1371, 7
          %v1373 = vsub.s32 1, %v1372
          %v1374 = vrot.slane %v1365, %v1373
          %v1377 = vadd.f32 %v1301, %v1370
          %v1378 = vadd.f32 %v1302, %v1374
          %v1379 = vadd.f32 %v1303, %v1370
          %v1380 = vadd.f32 %v1304, %v1374
          %v1381 = vadd.f32 %v1305, %v1370
          %v1382 = vadd.f32 %v1306, %v1374
          %v1383 = vadd.f32 %v1307, %v1370
          %v1384 = vadd.f32 %v1308, %v1374
          %v1385 = vadd.f32 %v1309, %v1370
          %v1386 = vadd.f32 %v1310, %v1374
          %v1387 = vadd.f32 %v1311, %v1370
          %v1388 = vadd.f32 %v1312, %v1374
          %v1389 = vadd.f32 %v1313, %v1370
          %v1390 = vadd.f32 %v1314, %v1374
          %v1391 = vadd.f32 %v1315, %v1370
          %v1392 = vadd.f32 %v1316, %v1374
          %v1393 = vadd.f32 %v1317, %v1370
          %v1394 = vadd.f32 %v1318, %v1374
          %v1395 = vadd.f32 %v1319, %v1370
          %v1396 = vadd.f32 %v1320, %v1374
          %v1397 = vadd.f32 %v1321, %v1370
          %v1398 = vadd.f32 %v1322, %v1374
          %v1399 = vadd.f32 %v1323, %v1370
          %v1400 = vadd.f32 %v1324, %v1374
          %v1401 = vadd.f32 %v1325, %v1370
          %v1402 = vadd.f32 %v1326, %v1374
          %v1403 = vadd.f32 %v1327, %v1370
          %v1404 = vadd.f32 %v1328, %v1374
          %v1405 = vadd.f32 %v1329, %v1370
          %v1406 = vadd.f32 %v1330, %v1374
          %v1407 = vadd.f32 %v1331, %v1370
          %v1408 = vadd.f32 %v1332, %v1374
          %v1409 = vadd.f32 %v1333, %v1370
          %v1410 = vadd.f32 %v1334, %v1374
          %v1411 = vadd.f32 %v1335, %v1370
          %v1412 = vadd.f32 %v1336, %v1374
          %v1413 = vadd.f32 %v1337, %v1370
          %v1414 = vadd.f32 %v1338, %v1374
          %v1415 = vadd.f32 %v1339, %v1370
          %v1416 = vadd.f32 %v1340, %v1374
          %v1417 = vadd.f32 %v1341, %v1370
          %v1418 = vadd.f32 %v1342, %v1374
          %v1419 = vadd.f32 %v1343, %v1370
          %v1420 = vadd.f32 %v1344, %v1374
          %v1421 = vadd.f32 %v1345, %v1370
          %v1422 = vadd.f32 %v1346, %v1374
          %v1423 = vadd.f32 %v1347, %v1370
          %v1424 = vadd.f32 %v1348, %v1374
          %v1425 = vadd.f32 %v1349, %v1370
          %v1426 = vadd.f32 %v1350, %v1374
          %v1427 = vadd.f32 %v1351, %v1370
          %v1428 = vadd.f32 %v1352, %v1374
          %v1429 = vadd.f32 %v1353, %v1370
          %v1430 = vadd.f32 %v1354, %v1374
          %v1431 = vadd.f32 %v1355, %v1370
          %v1432 = vadd.f32 %v1356, %v1374
          %v1433 = vadd.f32 %v1357, %v1370
          %v1434 = vadd.f32 %v1358, %v1374
          %v1435 = vadd.f32 %v1359, %v1370
          %v1436 = vadd.f32 %v1360, %v1374
          %v1437 = vadd.f32 %v1361, %v1370
          %v1438 = vadd.f32 %v1362, %v1374
          %v1439 = vadd.f32 %v1363, %v1370
          %v1440 = vadd.f32 %v1364, %v1374
          %v1441 = vmul.f32 %v1377, 0.044194173
          %v1442 = vmul.f32 %v1378, 0.044194173
          %v1443 = vmul.f32 %v1379, 0.044194173
          %v1444 = vmul.f32 %v1380, 0.044194173
          %v1445 = vmul.f32 %v1381, 0.044194173
          %v1446 = vmul.f32 %v1382, 0.044194173
          %v1447 = vmul.f32 %v1383, 0.044194173
          %v1448 = vmul.f32 %v1384, 0.044194173
          %v1449 = vmul.f32 %v1385, 0.044194173
          %v1450 = vmul.f32 %v1386, 0.044194173
          %v1451 = vmul.f32 %v1387, 0.044194173
          %v1452 = vmul.f32 %v1388, 0.044194173
          %v1453 = vmul.f32 %v1389, 0.044194173
          %v1454 = vmul.f32 %v1390, 0.044194173
          %v1455 = vmul.f32 %v1391, 0.044194173
          %v1456 = vmul.f32 %v1392, 0.044194173
          %v1457 = vmul.f32 %v1393, 0.044194173
          %v1458 = vmul.f32 %v1394, 0.044194173
          %v1459 = vmul.f32 %v1395, 0.044194173
          %v1460 = vmul.f32 %v1396, 0.044194173
          %v1461 = vmul.f32 %v1397, 0.044194173
          %v1462 = vmul.f32 %v1398, 0.044194173
          %v1463 = vmul.f32 %v1399, 0.044194173
          %v1464 = vmul.f32 %v1400, 0.044194173
          %v1465 = vmul.f32 %v1401, 0.044194173
          %v1466 = vmul.f32 %v1402, 0.044194173
          %v1467 = vmul.f32 %v1403, 0.044194173
          %v1468 = vmul.f32 %v1404, 0.044194173
          %v1469 = vmul.f32 %v1405, 0.044194173
          %v1470 = vmul.f32 %v1406, 0.044194173
          %v1471 = vmul.f32 %v1407, 0.044194173
          %v1472 = vmul.f32 %v1408, 0.044194173
          %v1473 = vmul.f32 %v1409, 0.044194173
          %v1474 = vmul.f32 %v1410, 0.044194173
          %v1475 = vmul.f32 %v1411, 0.044194173
          %v1476 = vmul.f32 %v1412, 0.044194173
          %v1477 = vmul.f32 %v1413, 0.044194173
          %v1478 = vmul.f32 %v1414, 0.044194173
          %v1479 = vmul.f32 %v1415, 0.044194173
          %v1480 = vmul.f32 %v1416, 0.044194173
          %v1481 = vmul.f32 %v1417, 0.044194173
          %v1482 = vmul.f32 %v1418, 0.044194173
          %v1483 = vmul.f32 %v1419, 0.044194173
          %v1484 = vmul.f32 %v1420, 0.044194173
          %v1485 = vmul.f32 %v1421, 0.044194173
          %v1486 = vmul.f32 %v1422, 0.044194173
          %v1487 = vmul.f32 %v1423, 0.044194173
          %v1488 = vmul.f32 %v1424, 0.044194173
          %v1489 = vmul.f32 %v1425, 0.044194173
          %v1490 = vmul.f32 %v1426, 0.044194173
          %v1491 = vmul.f32 %v1427, 0.044194173
          %v1492 = vmul.f32 %v1428, 0.044194173
          %v1493 = vmul.f32 %v1429, 0.044194173
          %v1494 = vmul.f32 %v1430, 0.044194173
          %v1495 = vmul.f32 %v1431, 0.044194173
          %v1496 = vmul.f32 %v1432, 0.044194173
          %v1497 = vmul.f32 %v1433, 0.044194173
          %v1498 = vmul.f32 %v1434, 0.044194173
          %v1499 = vmul.f32 %v1435, 0.044194173
          %v1500 = vmul.f32 %v1436, 0.044194173
          %v1501 = vmul.f32 %v1437, 0.044194173
          %v1502 = vmul.f32 %v1438, 0.044194173
          %v1503 = vmul.f32 %v1439, 0.044194173
          %v1504 = vmul.f32 %v1440, 0.044194173
          %1505 = vst [vmem:[%s256] sm:$0xff] %v1441
          %1506 = vst [vmem:[%s256 + $0x8] sm:$0xff] %v1442
          %1507 = vst [vmem:[%s256 + $0x10] sm:$0xff] %v1443
          %1508 = vst [vmem:[%s256 + $0x18] sm:$0xff] %v1444
          %1509 = vst [vmem:[%s256 + $0x20] sm:$0xff] %v1445
          %1510 = vst [vmem:[%s256 + $0x28] sm:$0xff] %v1446
          %1511 = vst [vmem:[%s256 + $0x30] sm:$0xff] %v1447
          %1512 = vst [vmem:[%s256 + $0x38] sm:$0xff] %v1448
          %1513 = vst [vmem:[%s256 + $0x40] sm:$0xff] %v1449
          %1514 = vst [vmem:[%s256 + $0x48] sm:$0xff] %v1450
          %1515 = vst [vmem:[%s256 + $0x50] sm:$0xff] %v1451
          %1516 = vst [vmem:[%s256 + $0x58] sm:$0xff] %v1452
          %1517 = vst [vmem:[%s256 + $0x60] sm:$0xff] %v1453
          %1518 = vst [vmem:[%s256 + $0x68] sm:$0xff] %v1454
          %1519 = vst [vmem:[%s256 + $0x70] sm:$0xff] %v1455
          %1520 = vst [vmem:[%s256 + $0x78] sm:$0xff] %v1456
          %1521 = vst [vmem:[%s256 + $0x80] sm:$0xff] %v1457
          %1522 = vst [vmem:[%s256 + $0x88] sm:$0xff] %v1458
          %1523 = vst [vmem:[%s256 + $0x90] sm:$0xff] %v1459
          %1524 = vst [vmem:[%s256 + $0x98] sm:$0xff] %v1460
          %1525 = vst [vmem:[%s256 + $0xa0] sm:$0xff] %v1461
          %1526 = vst [vmem:[%s256 + $0xa8] sm:$0xff] %v1462
          %1527 = vst [vmem:[%s256 + $0xb0] sm:$0xff] %v1463
          %1528 = vst [vmem:[%s256 + $0xb8] sm:$0xff] %v1464
          %1529 = vst [vmem:[%s256 + $0xc0] sm:$0xff] %v1465
          %1530 = vst [vmem:[%s256 + $0xc8] sm:$0xff] %v1466
          %1531 = vst [vmem:[%s256 + $0xd0] sm:$0xff] %v1467
          %1532 = vst [vmem:[%s256 + $0xd8] sm:$0xff] %v1468
          %1533 = vst [vmem:[%s256 + $0xe0] sm:$0xff] %v1469
          %1534 = vst [vmem:[%s256 + $0xe8] sm:$0xff] %v1470
          %1535 = vst [vmem:[%s256 + $0xf0] sm:$0xff] %v1471
          %1536 = vst [vmem:[%s256 + $0xf8] sm:$0xff] %v1472
          %1537 = vst [vmem:[%s256 + $0x100] sm:$0xff] %v1473
          %1538 = vst [vmem:[%s256 + $0x108] sm:$0xff] %v1474
          %1539 = vst [vmem:[%s256 + $0x110] sm:$0xff] %v1475
          %1540 = vst [vmem:[%s256 + $0x118] sm:$0xff] %v1476
          %1541 = vst [vmem:[%s256 + $0x120] sm:$0xff] %v1477
          %1542 = vst [vmem:[%s256 + $0x128] sm:$0xff] %v1478
          %1543 = vst [vmem:[%s256 + $0x130] sm:$0xff] %v1479
          %1544 = vst [vmem:[%s256 + $0x138] sm:$0xff] %v1480
          %1545 = vst [vmem:[%s256 + $0x140] sm:$0xff] %v1481
          %1546 = vst [vmem:[%s256 + $0x148] sm:$0xff] %v1482
          %1547 = vst [vmem:[%s256 + $0x150] sm:$0xff] %v1483
          %1548 = vst [vmem:[%s256 + $0x158] sm:$0xff] %v1484
          %1549 = vst [vmem:[%s256 + $0x160] sm:$0xff] %v1485
          %1550 = vst [vmem:[%s256 + $0x168] sm:$0xff] %v1486
          %1551 = vst [vmem:[%s256 + $0x170] sm:$0xff] %v1487
          %1552 = vst [vmem:[%s256 + $0x178] sm:$0xff] %v1488
          %1553 = vst [vmem:[%s256 + $0x180] sm:$0xff] %v1489
          %1554 = vst [vmem:[%s256 + $0x188] sm:$0xff] %v1490
          %1555 = vst [vmem:[%s256 + $0x190] sm:$0xff] %v1491
          %1556 = vst [vmem:[%s256 + $0x198] sm:$0xff] %v1492
          %1557 = vst [vmem:[%s256 + $0x1a0] sm:$0xff] %v1493
          %1558 = vst [vmem:[%s256 + $0x1a8] sm:$0xff] %v1494
          %1559 = vst [vmem:[%s256 + $0x1b0] sm:$0xff] %v1495
          %1560 = vst [vmem:[%s256 + $0x1b8] sm:$0xff] %v1496
          %1561 = vst [vmem:[%s256 + $0x1c0] sm:$0xff] %v1497
          %1562 = vst [vmem:[%s256 + $0x1c8] sm:$0xff] %v1498
          %1563 = vst [vmem:[%s256 + $0x1d0] sm:$0xff] %v1499
          %1564 = vst [vmem:[%s256 + $0x1d8] sm:$0xff] %v1500
          %1565 = vst [vmem:[%s256 + $0x1e0] sm:$0xff] %v1501
          %1566 = vst [vmem:[%s256 + $0x1e8] sm:$0xff] %v1502
          %1567 = vst [vmem:[%s256 + $0x1f0] sm:$0xff] %v1503
          %1568 = vst [vmem:[%s256 + $0x1f8] sm:$0xff] %v1504
        $region48: #{tpu_custom_call.1} parent=31 // pred_fallthru
          _
        %s1569 = sand.u32 %s132, 1
        %s1570 = scalar_lea.sflag [#allocation5], %s1569
        %s1571 = sand.u32 %s132, 1
        %s1572 = smul.addr %s1571, 512
        %s1573 = scalar_lea.vmem [#allocation8], %s1572
        // Predicated region
        $region49: #{tpu_custom_call.1} parent=31 // pred_check
          %p1574 = pneg %p142
        $region50: #{tpu_custom_call.1} parent=31 // pred_check_branch
          %1576 = sbr.rel (%p1574) target = $region52
        $region51: #{tpu_custom_call.1} parent=31 // pred_region
          %s1577 = smul.u32 32, %s26
          %s1578 = smul.u32 2, %s27
          %s1580 = ssub.s32 8192, 8192
          %1581 = vsyncadd %s1570, %s1580
          %s1582 = smul.addr %s1577, 4
          %s1583 = sadd.s32 %s1578, %s1582
          %s1584 = smul.addr %s1583, 128
          %s1585 = scalar_lea.hbm %s3, %s1584
          %s1586 = sshll.u32 %s1573, 4
          %s1587 = int_to_ptr.vmem [resolvable:$true] %s1586
          %1592 = dma.vmem_to_hbm [thread:$0]  %s1587, 8192, %s1585, %s1570, 256, 512, 16
        $region52: #{tpu_custom_call.1} parent=31 // pred_fallthru
          _
      $region32: #{tpu_custom_call.1} parent=5 // pred_fallthru
        _
      %p1593 = scmp.le.s32.totalorder 2, %s16
      // Predicated region
      $region53: #{tpu_custom_call.1} parent=5 // pred_check
        %p1594 = pneg %p1593
      $region54: #{tpu_custom_call.1} parent=5 // pred_check_branch
        %1596 = sbr.rel (%p1594) target = $region56
      $region55: #{tpu_custom_call.1} parent=5 // pred_region
        %s1597 = ssub.s32 %s16, 2
        // Predicated region
        $region57: #{tpu_custom_call.1} parent=55 // pred_check
          %p1598 = pneg %p148
        $region58: #{tpu_custom_call.1} parent=55 // pred_check_branch
          %1600 = sbr.rel (%p1598) target = $region60
        $region59: #{tpu_custom_call.1} parent=55 // pred_region
          %s1601 = sand.u32 %s133, 1
          %s1602 = scalar_lea.sflag [#allocation5], %s1601
          %s1603 = sand.u32 %s133, 1
          %s1604 = smul.addr %s1603, 512
          %s1605 = scalar_lea.vmem [#allocation8], %s1604
          %1606 = dma.done %s1602, 8192
        $region60: #{tpu_custom_call.1} parent=55 // pred_fallthru
          _
      $region56: #{tpu_custom_call.1} parent=5 // pred_fallthru
        _
    $region6: #{tpu_custom_call.1} parent=1 // loop_footer
      %s20 = sadd.s32 1, %s16
    $region7: #{tpu_custom_call.1} parent=1 // loop_footer_branch
      %15 = sbr.rel target = $region3
    $region8: #{tpu_custom_call.1} parent=1 // loop_exit
      _
    %1607 = vsyncpa [#allocation4], 1
    %s1608 = scalar_lea.sflag [#allocation4], 1
    %1609 = vsyncpa %s1608, 1
    %1610 = vsyncpa [#allocation7], 1
    %s1611 = scalar_lea.sflag [#allocation7], 1
    %1612 = vsyncpa %s1611, 1
    %1613 = vsyncpa [#allocation5], 1
    %s1614 = scalar_lea.sflag [#allocation5], 1
    %1615 = vsyncpa %s1614, 1

</llo_original>
